<compile_context>
chip_gen: v7x
topology: tpu7x:2x2x1
jax: 0.10.0
libtpu: 0.0.40
codegen_flags: <defaults>
</compile_context>

<pallas_src>
import functools

import jax
import jax.numpy as jnp
import numpy as np
from jax.experimental import pallas as pl
from jax.experimental.pallas import tpu as pltpu

EPS = 1e-5


def _sigmoid(x):
    # NOTE: the divide could be routed to the EUP via pl.reciprocal(..., approx=True)
    # for a little extra VALU headroom; kept exact so the numerical check stays tight.
    return 1.0 / (1.0 + jnp.exp(-x))


def _layer_norm(x, gamma, beta):
    mu = jnp.mean(x, axis=-1, keepdims=True)
    var = jnp.mean((x - mu) ** 2, axis=-1, keepdims=True)
    return (x - mu) * jax.lax.rsqrt(var + EPS) * gamma + beta


def _conv_module_kernel(
    # ---- inputs ----
    x_hbm,                # (B, T_pad + 2*PAD, D) raw HBM ref (memory_space=pl.ANY)
    keep_ref,             # (tT, 1) f32: 1.0 = keep, 0.0 = masked_fill(0)
    ln1g_ref, ln1b_ref,   # (1, D)
    w1a_ref, b1a_ref,     # (D, D) mm_dtype, (1, D) f32   -- GLU value path
    w1b_ref, b1b_ref,     # (D, D) mm_dtype, (1, D) f32   -- GLU gate path
    dw_ref, db_ref,       # (K, D), (1, D)                -- depthwise conv
    ln2g_ref, ln2b_ref,   # (1, D)
    w2_ref, b2_ref,       # (D, D) mm_dtype, (1, D)       -- final Linear
    # ---- outputs ----
    o_ref,                # (tT, D)
    # ---- scratch ----
    x_buf,                # VMEM (tT + 2*PAD, D) f32  : haloed x window
    z_buf,                # VMEM (tT + 2*PAD, D) f32  : haloed (zero-padded) z
    dma_sem,              # DMA semaphore
    *, T, tT, PAD, K, D, mm_dtype):
    b = pl.program_id(0)
    i = pl.program_id(1)
    win = tT + 2 * PAD

    # ---- fetch the haloed input window: rows [i*tT, i*tT + win) of the padded x ----
    t0 = pl.multiple_of(i * tT, tT)
    cp = pltpu.make_async_copy(x_hbm.at[b, pl.ds(t0, win), :], x_buf, dma_sem.at[0])
    cp.start()
    cp.wait()

    # ---- LayerNorm 1 (f32), halo rows included (they are per-timestep ops) ----
    h = _layer_norm(x_buf[...], ln1g_ref[...], ln1b_ref[...])
    hb = h.astype(mm_dtype)

    # ---- 1x1 bottleneck conv (D -> 2D) + GLU as two (win,D)x(D,D) MXU matmuls ----
    a = jnp.dot(hb, w1a_ref[...], preferred_element_type=jnp.float32) + b1a_ref[...]
    g = jnp.dot(hb, w1b_ref[...], preferred_element_type=jnp.float32) + b1b_ref[...]
    z = a * _sigmoid(g)

    # Zero halo rows that fall outside the real sequence [0, T): matches the zero
    # 'same' padding of the depthwise conv in the reference module.
    gidx = i * tT + jax.lax.broadcasted_iota(jnp.int32, (win, 1), 0)
    valid = (gidx >= PAD) & (gidx < PAD + T)
    z_buf[...] = jnp.where(valid, z, 0.0)

    # ---- depthwise conv along time (groups=D, kernel K): K offset loads + FMAs ----
    acc = jnp.zeros((tT, D), dtype=jnp.float32)
    for k in range(K):                      # K is small & static -> unrolled
        acc = acc + z_buf[pl.ds(k, tT), :] * dw_ref[k:k + 1, :]
    acc = acc + db_ref[...]

    # ---- LayerNorm 2 + Swish + Linear(D->D); Dropout(p=0) is identity ----
    h2 = _layer_norm(acc, ln2g_ref[...], ln2b_ref[...])
    s = h2 * _sigmoid(h2)
    out = jnp.dot(s.astype(mm_dtype), w2_ref[...],
                  preferred_element_type=jnp.float32) + b2_ref[...]

    # ---- fused masked_fill(mask, 0.0) ----
    o_ref[...] = (out * keep_ref[...]).astype(o_ref.dtype)


def conformer_conv_module(x, params, kernel_size, mask=None, block_t=128,
                          matmul_dtype=jnp.bfloat16):
    """x: (B, T, D) f32. params: dict (see init_params). mask: optional (B,T,1)/(B,T) bool."""
    B, T, D = x.shape
    K = kernel_size
    assert K % 2 == 1, "non-causal 'same' depthwise conv expects an odd kernel_size"
    PAD = (K - 1) // 2                       # non-causal 'same' padding, dilation = 1

    # Time tile (sublane-aligned); pad T up to a multiple of it.
    tT = min(block_t, ((T + 7) // 8) * 8)
    tT = max(8, (tT // 8) * 8)
    nT = pl.cdiv(T, tT)
    T_pad = nT * tT
    win = tT + 2 * PAD

    # Pad time so every haloed window is in-range. Pad values never reach the output:
    # z is explicitly zeroed outside [0, T) inside the kernel and extra rows are sliced.
    x_pad = jnp.pad(x, ((0, 0), (PAD, PAD + (T_pad - T)), (0, 0)))

    if mask is None:
        keep = jnp.ones((B, T_pad, 1), jnp.float32)
    else:
        keep = 1.0 - mask.astype(jnp.float32).reshape(B, T, 1)
        keep = jnp.pad(keep, ((0, 0), (0, T_pad - T), (0, 0)))

    # Split the GLU weight/bias into value & gate halves; weights in bf16 for the MXU.
    w1a = params["w1"][:, :D].astype(matmul_dtype)
    w1b = params["w1"][:, D:].astype(matmul_dtype)
    b1a = params["b1"][:, :D]
    b1b = params["b1"][:, D:]
    w2 = params["w2"].astype(matmul_dtype)

    rep = lambda b, i: (0, 0)
    kernel = functools.partial(_conv_module_kernel, T=T, tT=tT, PAD=PAD, K=K, D=D,
                               mm_dtype=matmul_dtype)

    # Conservative per-step VMEM estimate -> scoped VMEM limit (headroom under v7x 64 MiB).
    mm_bytes = jnp.dtype(matmul_dtype).itemsize
    est = (2 * win * D * 4                              # x / z scratch
           + 2 * 2 * (tT * D * 4 + tT * 4)              # out + keep blocks, double buffered
           + 2 * (3 * D * D * mm_bytes + (6 + K) * D * 4)   # weights / small params
           + 8 * win * D * 4)                           # live intermediates (h, a, g, acc, ...)
    vmem_limit = int(min(48 * 2**20, max(32 * 2**20, 2 * est)))

    out = pl.pallas_call(
        kernel,
        out_shape=jax.ShapeDtypeStruct((B, T_pad, D), x.dtype),
        grid_spec=pltpu.PrefetchScalarGridSpec(
            num_scalar_prefetch=0,
            grid=(B, nT),
            in_specs=[
                pl.BlockSpec(memory_space=pl.ANY),                    # x_pad (manual halo DMA)
                pl.BlockSpec((None, tT, 1), lambda b, i: (b, i, 0)),  # keep multiplier
                pl.BlockSpec((1, D), rep), pl.BlockSpec((1, D), rep),    # ln1 gamma / beta
                pl.BlockSpec((D, D), rep), pl.BlockSpec((1, D), rep),    # w1a / b1a
                pl.BlockSpec((D, D), rep), pl.BlockSpec((1, D), rep),    # w1b / b1b
                pl.BlockSpec((K, D), rep), pl.BlockSpec((1, D), rep),    # dw / db
                pl.BlockSpec((1, D), rep), pl.BlockSpec((1, D), rep),    # ln2 gamma / beta
                pl.BlockSpec((D, D), rep), pl.BlockSpec((1, D), rep),    # w2 / b2
            ],
            out_specs=pl.BlockSpec((None, tT, D), lambda b, i: (b, i, 0)),
            scratch_shapes=[
                pltpu.VMEM((win, D), jnp.float32),     # haloed x tile
                pltpu.VMEM((win, D), jnp.float32),     # haloed (zero-padded) z tile
                pltpu.SemaphoreType.DMA((1,)),
            ],
        ),
        compiler_params=pltpu.CompilerParams(
            dimension_semantics=("parallel", "parallel"),
            vmem_limit_bytes=vmem_limit,
        ),
    )(x_pad, keep, params["ln1_g"], params["ln1_b"], w1a, b1a, w1b, b1b,
      params["dw"], params["db"], params["ln2_g"], params["ln2_b"], w2, params["b2"])

    return out[:, :T, :]


def reference_forward(x, params, kernel_size, mask=None, matmul_dtype=jnp.bfloat16):
    """Pure-JAX reference of the PyTorch forward (non-causal path), same matmul dtype."""
    B, T, D = x.shape
    K = kernel_size
    PAD = (K - 1) // 2
    h = _layer_norm(x, params["ln1_g"], params["ln1_b"])
    y = jnp.einsum("btd,de->bte", h.astype(matmul_dtype),
                   params["w1"].astype(matmul_dtype),
                   preferred_element_type=jnp.float32) + params["b1"]
    z = y[..., :D] * _sigmoid(y[..., D:])
    zp = jnp.pad(z, ((0, 0), (PAD, PAD), (0, 0)))
    acc = jnp.zeros_like(z)
    for k in range(K):
        acc = acc + zp[:, k:k + T, :] * params["dw"][k][None, None, :]
    acc = acc + params["db"]
    h2 = _layer_norm(acc, params["ln2_g"], params["ln2_b"])
    s = h2 * _sigmoid(h2)
    out = jnp.einsum("btd,de->bte", s.astype(matmul_dtype),
                     params["w2"].astype(matmul_dtype),
                     preferred_element_type=jnp.float32) + params["b2"]
    if mask is not None:
        out = jnp.where(mask.reshape(B, T, 1), 0.0, out)
    return out


def init_params(key, D, K):
    ks = jax.random.split(key, 6)
    scale = 0.1
    return {
        "ln1_g": jnp.ones((1, D), jnp.float32),
        "ln1_b": jnp.zeros((1, D), jnp.float32),
        # torch Conv1d(D, 2D, 1) weight is (2D, D, 1); stored transposed as (D, 2D)
        "w1": scale * jax.random.normal(ks[0], (D, 2 * D), jnp.float32),
        "b1": scale * jax.random.normal(ks[1], (1, 2 * D), jnp.float32),
        # torch depthwise Conv1d weight is (D, 1, K); stored as (K, D)
        "dw": scale * jax.random.normal(ks[2], (K, D), jnp.float32),
        "db": scale * jax.random.normal(ks[3], (1, D), jnp.float32),
        "ln2_g": jnp.ones((1, D), jnp.float32),
        "ln2_b": jnp.zeros((1, D), jnp.float32),
        # torch Linear(D, D) weight is (D, D); stored transposed
        "w2": scale * jax.random.normal(ks[4], (D, D), jnp.float32),
        "b2": scale * jax.random.normal(ks[5], (1, D), jnp.float32),
    }


if __name__ == "__main__":
    # Small deterministic shapes; module default kernel_size=31 works identically.
    B, T, D, K = 2, 32, 128, 15
    key = jax.random.PRNGKey(0)
    kx, kp = jax.random.split(key)
    x = jax.random.normal(kx, (B, T, D), jnp.float32)
    params = init_params(kp, D, K)

    # Padding mask like speechbrain's conv_mask: (B, T, 1) bool, True = masked.
    lengths = jnp.array([T, T - 5])
    mask = (jnp.arange(T)[None, :] >= lengths[:, None])[:, :, None]

    # block_t=16 -> 2 time tiles per batch element (exercises the halo path).
    out_nomask = conformer_conv_module(x, params, kernel_size=K, mask=None, block_t=16)
    out_masked = conformer_conv_module(x, params, kernel_size=K, mask=mask, block_t=16)
    out_nomask = jax.block_until_ready(out_nomask)
    out_masked = jax.block_until_ready(out_masked)

    ref_nomask = reference_forward(x, params, kernel_size=K, mask=None)
    ref_masked = reference_forward(x, params, kernel_size=K, mask=mask)

    np.testing.assert_allclose(np.asarray(out_nomask), np.asarray(ref_nomask),
                               rtol=2e-3, atol=2e-3)
    np.testing.assert_allclose(np.asarray(out_masked), np.asarray(ref_masked),
                               rtol=2e-3, atol=2e-3)
    print("KERNEL_OK")
</pallas_src>

<mosaic_0001>
module attributes {stable_mosaic.version = 11 : i64} {
  func.func @_conv_module_kernel(%arg0: i32, %arg1: i32, %arg2: memref<2x46x128xf32, #tpu.memory_space<any>>, %arg3: memref<1x16x1xf32, #tpu.memory_space<vmem>>, %arg4: memref<1x128xf32, #tpu.memory_space<vmem>>, %arg5: memref<1x128xf32, #tpu.memory_space<vmem>>, %arg6: memref<128x128xbf16, #tpu.memory_space<vmem>>, %arg7: memref<1x128xf32, #tpu.memory_space<vmem>>, %arg8: memref<128x128xbf16, #tpu.memory_space<vmem>>, %arg9: memref<1x128xf32, #tpu.memory_space<vmem>>, %arg10: memref<15x128xf32, #tpu.memory_space<vmem>>, %arg11: memref<1x128xf32, #tpu.memory_space<vmem>>, %arg12: memref<1x128xf32, #tpu.memory_space<vmem>>, %arg13: memref<1x128xf32, #tpu.memory_space<vmem>>, %arg14: memref<128x128xbf16, #tpu.memory_space<vmem>>, %arg15: memref<1x128xf32, #tpu.memory_space<vmem>>, %arg16: memref<1x16x128xf32, #tpu.memory_space<vmem>>, %arg17: memref<30x128xf32, #tpu.memory_space<vmem>>, %arg18: memref<30x128xf32, #tpu.memory_space<vmem>>, %arg19: memref<1x!tpu.dma_semaphore, #tpu.memory_space<semaphore_mem>>) attributes {dimension_semantics = [#tpu.dimension_semantics<parallel>, #tpu.dimension_semantics<parallel>], iteration_bounds = array<i64: 2, 2>, scalar_prefetch = 0 : i64, scratch_operands = 3 : i64, tpu.core_type = #tpu.core_type<tc>, window_params = [{}, {transform_indices = @transform_1, window_bounds = array<i64: 1, 16, 1>}, {pipeline_mode = #tpu.pipeline_mode<synchronous>, transform_indices = @transform_2, window_bounds = array<i64: 1, 128>}, {pipeline_mode = #tpu.pipeline_mode<synchronous>, transform_indices = @transform_3, window_bounds = array<i64: 1, 128>}, {pipeline_mode = #tpu.pipeline_mode<synchronous>, transform_indices = @transform_4, window_bounds = array<i64: 128, 128>}, {pipeline_mode = #tpu.pipeline_mode<synchronous>, transform_indices = @transform_5, window_bounds = array<i64: 1, 128>}, {pipeline_mode = #tpu.pipeline_mode<synchronous>, transform_indices = @transform_6, window_bounds = array<i64: 128, 128>}, {pipeline_mode = #tpu.pipeline_mode<synchronous>, transform_indices = @transform_7, window_bounds = array<i64: 1, 128>}, {pipeline_mode = #tpu.pipeline_mode<synchronous>, transform_indices = @transform_8, window_bounds = array<i64: 15, 128>}, {pipeline_mode = #tpu.pipeline_mode<synchronous>, transform_indices = @transform_9, window_bounds = array<i64: 1, 128>}, {pipeline_mode = #tpu.pipeline_mode<synchronous>, transform_indices = @transform_10, window_bounds = array<i64: 1, 128>}, {pipeline_mode = #tpu.pipeline_mode<synchronous>, transform_indices = @transform_11, window_bounds = array<i64: 1, 128>}, {pipeline_mode = #tpu.pipeline_mode<synchronous>, transform_indices = @transform_12, window_bounds = array<i64: 128, 128>}, {pipeline_mode = #tpu.pipeline_mode<synchronous>, transform_indices = @transform_13, window_bounds = array<i64: 1, 128>}, {transform_indices = @transform_14, window_bounds = array<i64: 1, 16, 128>}]} {
    %c16_i32 = arith.constant 16 : i32
    %0 = arith.muli %arg1, %c16_i32 : i32
    %1 = tpu.assume_multiple %0, 16 : i32
    %c0_i32 = arith.constant 0 : i32
    %c0_i32_0 = arith.constant 0 : i32
    %2 = tpu.memref_slice %arg2[%arg0, %1, %c0_i32_0] : memref<2x46x128xf32, #tpu.memory_space<any>> -> memref<1x30x128xf32, #tpu.memory_space<any>>
    %3 = tpu.memref_squeeze %2 : memref<1x30x128xf32, #tpu.memory_space<any>> -> memref<30x128xf32, #tpu.memory_space<any>>
    %4 = tpu.memref_slice %arg19[%c0_i32] : memref<1x!tpu.dma_semaphore, #tpu.memory_space<semaphore_mem>> -> memref<1x!tpu.dma_semaphore, #tpu.memory_space<semaphore_mem>>
    %5 = tpu.memref_squeeze %4 : memref<1x!tpu.dma_semaphore, #tpu.memory_space<semaphore_mem>> -> memref<!tpu.dma_semaphore, #tpu.memory_space<semaphore_mem>>
    tpu.enqueue_dma source(%3 : memref<30x128xf32, #tpu.memory_space<any>>) target(%arg17 : memref<30x128xf32, #tpu.memory_space<vmem>>) target_semaphore(%5 : memref<!tpu.dma_semaphore, #tpu.memory_space<semaphore_mem>>)
    %c0_i32_1 = arith.constant 0 : i32
    %c0_i32_2 = arith.constant 0 : i32
    %6 = tpu.memref_slice %arg2[%arg0, %1, %c0_i32_2] : memref<2x46x128xf32, #tpu.memory_space<any>> -> memref<1x30x128xf32, #tpu.memory_space<any>>
    %7 = tpu.memref_squeeze %6 : memref<1x30x128xf32, #tpu.memory_space<any>> -> memref<30x128xf32, #tpu.memory_space<any>>
    %8 = tpu.memref_slice %arg19[%c0_i32_1] : memref<1x!tpu.dma_semaphore, #tpu.memory_space<semaphore_mem>> -> memref<1x!tpu.dma_semaphore, #tpu.memory_space<semaphore_mem>>
    %9 = tpu.memref_squeeze %8 : memref<1x!tpu.dma_semaphore, #tpu.memory_space<semaphore_mem>> -> memref<!tpu.dma_semaphore, #tpu.memory_space<semaphore_mem>>
    tpu.wait_dma2 semaphore(%9 : memref<!tpu.dma_semaphore, #tpu.memory_space<semaphore_mem>>) src(%7 : memref<30x128xf32, #tpu.memory_space<any>>) dst(%arg17 : memref<30x128xf32, #tpu.memory_space<vmem>>)
    %c0 = arith.constant 0 : index
    %c0_3 = arith.constant 0 : index
    %10 = vector.load %arg17[%c0, %c0_3] : memref<30x128xf32, #tpu.memory_space<vmem>>, vector<30x128xf32>
    %c0_4 = arith.constant 0 : index
    %c0_5 = arith.constant 0 : index
    %11 = vector.load %arg4[%c0_4, %c0_5] : memref<1x128xf32, #tpu.memory_space<vmem>>, vector<1x128xf32>
    %c0_6 = arith.constant 0 : index
    %c0_7 = arith.constant 0 : index
    %12 = vector.load %arg5[%c0_6, %c0_7] : memref<1x128xf32, #tpu.memory_space<vmem>>, vector<1x128xf32>
    %cst = arith.constant dense<0.000000e+00> : vector<30xf32>
    %13 = vector.multi_reduction <add>, %10, %cst [1] : vector<30x128xf32> to vector<30xf32>
    %14 = vector.shape_cast %13 : vector<30xf32> to vector<30x1xf32>
    %cst_8 = arith.constant 1.280000e+02 : f32
    %15 = vector.broadcast %cst_8 : f32 to vector<30x1xf32>
    %16 = arith.divf %14, %15 : vector<30x1xf32>
    %17 = vector.broadcast %16 : vector<30x1xf32> to vector<30x128xf32>
    %18 = arith.subf %10, %17 : vector<30x128xf32>
    %19 = arith.mulf %18, %18 : vector<30x128xf32>
    %cst_9 = arith.constant dense<0.000000e+00> : vector<30xf32>
    %20 = vector.multi_reduction <add>, %19, %cst_9 [1] : vector<30x128xf32> to vector<30xf32>
    %21 = vector.shape_cast %20 : vector<30xf32> to vector<30x1xf32>
    %cst_10 = arith.constant 1.280000e+02 : f32
    %22 = vector.broadcast %cst_10 : f32 to vector<30x1xf32>
    %23 = arith.divf %21, %22 : vector<30x1xf32>
    %24 = vector.broadcast %16 : vector<30x1xf32> to vector<30x128xf32>
    %25 = arith.subf %10, %24 : vector<30x128xf32>
    %cst_11 = arith.constant 9.99999974E-6 : f32
    %26 = vector.broadcast %cst_11 : f32 to vector<30x1xf32>
    %27 = arith.addf %23, %26 : vector<30x1xf32>
    %28 = math.rsqrt %27 : vector<30x1xf32>
    %29 = vector.broadcast %28 : vector<30x1xf32> to vector<30x128xf32>
    %30 = arith.mulf %25, %29 : vector<30x128xf32>
    %31 = vector.broadcast %11 : vector<1x128xf32> to vector<30x128xf32>
    %32 = arith.mulf %30, %31 : vector<30x128xf32>
    %33 = vector.broadcast %12 : vector<1x128xf32> to vector<30x128xf32>
    %34 = arith.addf %32, %33 : vector<30x128xf32>
    %35 = arith.truncf %34 : vector<30x128xf32> to vector<30x128xbf16>
    %c0_12 = arith.constant 0 : index
    %c0_13 = arith.constant 0 : index
    %36 = vector.load %arg6[%c0_12, %c0_13] : memref<128x128xbf16, #tpu.memory_space<vmem>>, vector<128x128xbf16>
    %cst_14 = arith.constant dense<0.000000e+00> : vector<30x128xf32>
    %37 = tpu.matmul %35, %36, %cst_14 {dimension_numbers = #tpu.dot_dimension_numbers<[1], [0], [0], [1], [0, 0, 1, 1], [], []>} : vector<30x128xbf16>, vector<128x128xbf16>, vector<30x128xf32> -> vector<30x128xf32>
    %c0_15 = arith.constant 0 : index
    %c0_16 = arith.constant 0 : index
    %38 = vector.load %arg7[%c0_15, %c0_16] : memref<1x128xf32, #tpu.memory_space<vmem>>, vector<1x128xf32>
    %39 = vector.broadcast %38 : vector<1x128xf32> to vector<30x128xf32>
    %40 = arith.addf %37, %39 : vector<30x128xf32>
    %c0_17 = arith.constant 0 : index
    %c0_18 = arith.constant 0 : index
    %41 = vector.load %arg8[%c0_17, %c0_18] : memref<128x128xbf16, #tpu.memory_space<vmem>>, vector<128x128xbf16>
    %cst_19 = arith.constant dense<0.000000e+00> : vector<30x128xf32>
    %42 = tpu.matmul %35, %41, %cst_19 {dimension_numbers = #tpu.dot_dimension_numbers<[1], [0], [0], [1], [0, 0, 1, 1], [], []>} : vector<30x128xbf16>, vector<128x128xbf16>, vector<30x128xf32> -> vector<30x128xf32>
    %c0_20 = arith.constant 0 : index
    %c0_21 = arith.constant 0 : index
    %43 = vector.load %arg9[%c0_20, %c0_21] : memref<1x128xf32, #tpu.memory_space<vmem>>, vector<1x128xf32>
    %44 = vector.broadcast %43 : vector<1x128xf32> to vector<30x128xf32>
    %45 = arith.addf %42, %44 : vector<30x128xf32>
    %cst_22 = arith.constant 0.000000e+00 : f32
    %46 = vector.broadcast %cst_22 : f32 to vector<30x128xf32>
    %47 = arith.subf %46, %45 : vector<30x128xf32>
    %48 = math.exp %47 : vector<30x128xf32>
    %cst_23 = arith.constant 1.000000e+00 : f32
    %49 = vector.broadcast %cst_23 : f32 to vector<30x128xf32>
    %50 = arith.addf %49, %48 : vector<30x128xf32>
    %cst_24 = arith.constant 1.000000e+00 : f32
    %51 = vector.broadcast %cst_24 : f32 to vector<30x128xf32>
    %52 = arith.divf %51, %50 : vector<30x128xf32>
    %53 = arith.mulf %40, %52 : vector<30x128xf32>
    %c16_i32_25 = arith.constant 16 : i32
    %54 = arith.muli %arg1, %c16_i32_25 : i32
    %55 = tpu.iota {dimensions = array<i32: 0>} : vector<30x1xi32>
    %56 = vector.broadcast %54 : i32 to vector<30x1xi32>
    %57 = arith.addi %56, %55 : vector<30x1xi32>
    %c7_i32 = arith.constant 7 : i32
    %58 = vector.broadcast %c7_i32 : i32 to vector<30x1xi32>
    %59 = arith.cmpi sge, %57, %58 : vector<30x1xi32>
    %c39_i32 = arith.constant 39 : i32
    %60 = vector.broadcast %c39_i32 : i32 to vector<30x1xi32>
    %61 = arith.cmpi slt, %57, %60 : vector<30x1xi32>
    %62 = arith.andi %59, %61 : vector<30x1xi1>
    %cst_26 = arith.constant 0.000000e+00 : f32
    %63 = vector.shape_cast %62 : vector<30x1xi1> to vector<30x1xi1>
    %64 = vector.broadcast %63 : vector<30x1xi1> to vector<30x128xi1>
    %65 = vector.broadcast %cst_26 : f32 to vector<30x128xf32>
    %66 = arith.select %64, %53, %65 : vector<30x128xi1>, vector<30x128xf32>
    %c0_27 = arith.constant 0 : index
    %c0_28 = arith.constant 0 : index
    %67 = vector.load %arg18[%c0_27, %c0_28] : memref<30x128xf32, #tpu.memory_space<vmem>>, vector<30x128xf32>
    tpu.vector_store %arg18[%c0_27, %c0_28], %66 {strides = array<i32>} : memref<30x128xf32, #tpu.memory_space<vmem>>, vector<30x128xf32>,
    %cst_29 = arith.constant 0.000000e+00 : f32
    %68 = vector.broadcast %cst_29 : f32 to vector<16x128xf32>
    %c0_30 = arith.constant 0 : index
    %c0_31 = arith.constant 0 : index
    %69 = vector.load %arg18[%c0_30, %c0_31] : memref<30x128xf32, #tpu.memory_space<vmem>>, vector<16x128xf32>
    %c0_32 = arith.constant 0 : index
    %c0_33 = arith.constant 0 : index
    %70 = vector.load %arg10[%c0_32, %c0_33] : memref<15x128xf32, #tpu.memory_space<vmem>>, vector<1x128xf32>
    %71 = vector.broadcast %70 : vector<1x128xf32> to vector<16x128xf32>
    %72 = arith.mulf %69, %71 : vector<16x128xf32>
    %73 = arith.addf %68, %72 : vector<16x128xf32>
    %c1 = arith.constant 1 : index
    %c0_34 = arith.constant 0 : index
    %74 = vector.load %arg18[%c1, %c0_34] : memref<30x128xf32, #tpu.memory_space<vmem>>, vector<16x128xf32>
    %c1_35 = arith.constant 1 : index
    %c0_36 = arith.constant 0 : index
    %75 = vector.load %arg10[%c1_35, %c0_36] : memref<15x128xf32, #tpu.memory_space<vmem>>, vector<1x128xf32>
    %76 = vector.broadcast %75 : vector<1x128xf32> to vector<16x128xf32>
    %77 = arith.mulf %74, %76 : vector<16x128xf32>
    %78 = arith.addf %73, %77 : vector<16x128xf32>
    %c2 = arith.constant 2 : index
    %c0_37 = arith.constant 0 : index
    %79 = vector.load %arg18[%c2, %c0_37] : memref<30x128xf32, #tpu.memory_space<vmem>>, vector<16x128xf32>
    %c2_38 = arith.constant 2 : index
    %c0_39 = arith.constant 0 : index
    %80 = vector.load %arg10[%c2_38, %c0_39] : memref<15x128xf32, #tpu.memory_space<vmem>>, vector<1x128xf32>
    %81 = vector.broadcast %80 : vector<1x128xf32> to vector<16x128xf32>
    %82 = arith.mulf %79, %81 : vector<16x128xf32>
    %83 = arith.addf %78, %82 : vector<16x128xf32>
    %c3 = arith.constant 3 : index
    %c0_40 = arith.constant 0 : index
    %84 = vector.load %arg18[%c3, %c0_40] : memref<30x128xf32, #tpu.memory_space<vmem>>, vector<16x128xf32>
    %c3_41 = arith.constant 3 : index
    %c0_42 = arith.constant 0 : index
    %85 = vector.load %arg10[%c3_41, %c0_42] : memref<15x128xf32, #tpu.memory_space<vmem>>, vector<1x128xf32>
    %86 = vector.broadcast %85 : vector<1x128xf32> to vector<16x128xf32>
    %87 = arith.mulf %84, %86 : vector<16x128xf32>
    %88 = arith.addf %83, %87 : vector<16x128xf32>
    %c4 = arith.constant 4 : index
    %c0_43 = arith.constant 0 : index
    %89 = vector.load %arg18[%c4, %c0_43] : memref<30x128xf32, #tpu.memory_space<vmem>>, vector<16x128xf32>
    %c4_44 = arith.constant 4 : index
    %c0_45 = arith.constant 0 : index
    %90 = vector.load %arg10[%c4_44, %c0_45] : memref<15x128xf32, #tpu.memory_space<vmem>>, vector<1x128xf32>
    %91 = vector.broadcast %90 : vector<1x128xf32> to vector<16x128xf32>
    %92 = arith.mulf %89, %91 : vector<16x128xf32>
    %93 = arith.addf %88, %92 : vector<16x128xf32>
    %c5 = arith.constant 5 : index
    %c0_46 = arith.constant 0 : index
    %94 = vector.load %arg18[%c5, %c0_46] : memref<30x128xf32, #tpu.memory_space<vmem>>, vector<16x128xf32>
    %c5_47 = arith.constant 5 : index
    %c0_48 = arith.constant 0 : index
    %95 = vector.load %arg10[%c5_47, %c0_48] : memref<15x128xf32, #tpu.memory_space<vmem>>, vector<1x128xf32>
    %96 = vector.broadcast %95 : vector<1x128xf32> to vector<16x128xf32>
    %97 = arith.mulf %94, %96 : vector<16x128xf32>
    %98 = arith.addf %93, %97 : vector<16x128xf32>
    %c6 = arith.constant 6 : index
    %c0_49 = arith.constant 0 : index
    %99 = vector.load %arg18[%c6, %c0_49] : memref<30x128xf32, #tpu.memory_space<vmem>>, vector<16x128xf32>
    %c6_50 = arith.constant 6 : index
    %c0_51 = arith.constant 0 : index
    %100 = vector.load %arg10[%c6_50, %c0_51] : memref<15x128xf32, #tpu.memory_space<vmem>>, vector<1x128xf32>
    %101 = vector.broadcast %100 : vector<1x128xf32> to vector<16x128xf32>
    %102 = arith.mulf %99, %101 : vector<16x128xf32>
    %103 = arith.addf %98, %102 : vector<16x128xf32>
    %c7 = arith.constant 7 : index
    %c0_52 = arith.constant 0 : index
    %104 = vector.load %arg18[%c7, %c0_52] : memref<30x128xf32, #tpu.memory_space<vmem>>, vector<16x128xf32>
    %c7_53 = arith.constant 7 : index
    %c0_54 = arith.constant 0 : index
    %105 = vector.load %arg10[%c7_53, %c0_54] : memref<15x128xf32, #tpu.memory_space<vmem>>, vector<1x128xf32>
    %106 = vector.broadcast %105 : vector<1x128xf32> to vector<16x128xf32>
    %107 = arith.mulf %104, %106 : vector<16x128xf32>
    %108 = arith.addf %103, %107 : vector<16x128xf32>
    %c8 = arith.constant 8 : index
    %c0_55 = arith.constant 0 : index
    %109 = vector.load %arg18[%c8, %c0_55] : memref<30x128xf32, #tpu.memory_space<vmem>>, vector<16x128xf32>
    %c8_56 = arith.constant 8 : index
    %c0_57 = arith.constant 0 : index
    %110 = vector.load %arg10[%c8_56, %c0_57] : memref<15x128xf32, #tpu.memory_space<vmem>>, vector<1x128xf32>
    %111 = vector.broadcast %110 : vector<1x128xf32> to vector<16x128xf32>
    %112 = arith.mulf %109, %111 : vector<16x128xf32>
    %113 = arith.addf %108, %112 : vector<16x128xf32>
    %c9 = arith.constant 9 : index
    %c0_58 = arith.constant 0 : index
    %114 = vector.load %arg18[%c9, %c0_58] : memref<30x128xf32, #tpu.memory_space<vmem>>, vector<16x128xf32>
    %c9_59 = arith.constant 9 : index
    %c0_60 = arith.constant 0 : index
    %115 = vector.load %arg10[%c9_59, %c0_60] : memref<15x128xf32, #tpu.memory_space<vmem>>, vector<1x128xf32>
    %116 = vector.broadcast %115 : vector<1x128xf32> to vector<16x128xf32>
    %117 = arith.mulf %114, %116 : vector<16x128xf32>
    %118 = arith.addf %113, %117 : vector<16x128xf32>
    %c10 = arith.constant 10 : index
    %c0_61 = arith.constant 0 : index
    %119 = vector.load %arg18[%c10, %c0_61] : memref<30x128xf32, #tpu.memory_space<vmem>>, vector<16x128xf32>
    %c10_62 = arith.constant 10 : index
    %c0_63 = arith.constant 0 : index
    %120 = vector.load %arg10[%c10_62, %c0_63] : memref<15x128xf32, #tpu.memory_space<vmem>>, vector<1x128xf32>
    %121 = vector.broadcast %120 : vector<1x128xf32> to vector<16x128xf32>
    %122 = arith.mulf %119, %121 : vector<16x128xf32>
    %123 = arith.addf %118, %122 : vector<16x128xf32>
    %c11 = arith.constant 11 : index
    %c0_64 = arith.constant 0 : index
    %124 = vector.load %arg18[%c11, %c0_64] : memref<30x128xf32, #tpu.memory_space<vmem>>, vector<16x128xf32>
    %c11_65 = arith.constant 11 : index
    %c0_66 = arith.constant 0 : index
    %125 = vector.load %arg10[%c11_65, %c0_66] : memref<15x128xf32, #tpu.memory_space<vmem>>, vector<1x128xf32>
    %126 = vector.broadcast %125 : vector<1x128xf32> to vector<16x128xf32>
    %127 = arith.mulf %124, %126 : vector<16x128xf32>
    %128 = arith.addf %123, %127 : vector<16x128xf32>
    %c12 = arith.constant 12 : index
    %c0_67 = arith.constant 0 : index
    %129 = vector.load %arg18[%c12, %c0_67] : memref<30x128xf32, #tpu.memory_space<vmem>>, vector<16x128xf32>
    %c12_68 = arith.constant 12 : index
    %c0_69 = arith.constant 0 : index
    %130 = vector.load %arg10[%c12_68, %c0_69] : memref<15x128xf32, #tpu.memory_space<vmem>>, vector<1x128xf32>
    %131 = vector.broadcast %130 : vector<1x128xf32> to vector<16x128xf32>
    %132 = arith.mulf %129, %131 : vector<16x128xf32>
    %133 = arith.addf %128, %132 : vector<16x128xf32>
    %c13 = arith.constant 13 : index
    %c0_70 = arith.constant 0 : index
    %134 = vector.load %arg18[%c13, %c0_70] : memref<30x128xf32, #tpu.memory_space<vmem>>, vector<16x128xf32>
    %c13_71 = arith.constant 13 : index
    %c0_72 = arith.constant 0 : index
    %135 = vector.load %arg10[%c13_71, %c0_72] : memref<15x128xf32, #tpu.memory_space<vmem>>, vector<1x128xf32>
    %136 = vector.broadcast %135 : vector<1x128xf32> to vector<16x128xf32>
    %137 = arith.mulf %134, %136 : vector<16x128xf32>
    %138 = arith.addf %133, %137 : vector<16x128xf32>
    %c14 = arith.constant 14 : index
    %c0_73 = arith.constant 0 : index
    %139 = vector.load %arg18[%c14, %c0_73] : memref<30x128xf32, #tpu.memory_space<vmem>>, vector<16x128xf32>
    %c14_74 = arith.constant 14 : index
    %c0_75 = arith.constant 0 : index
    %140 = vector.load %arg10[%c14_74, %c0_75] : memref<15x128xf32, #tpu.memory_space<vmem>>, vector<1x128xf32>
    %141 = vector.broadcast %140 : vector<1x128xf32> to vector<16x128xf32>
    %142 = arith.mulf %139, %141 : vector<16x128xf32>
    %143 = arith.addf %138, %142 : vector<16x128xf32>
    %c0_76 = arith.constant 0 : index
    %c0_77 = arith.constant 0 : index
    %144 = vector.load %arg11[%c0_76, %c0_77] : memref<1x128xf32, #tpu.memory_space<vmem>>, vector<1x128xf32>
    %145 = vector.broadcast %144 : vector<1x128xf32> to vector<16x128xf32>
    %146 = arith.addf %143, %145 : vector<16x128xf32>
    %c0_78 = arith.constant 0 : index
    %c0_79 = arith.constant 0 : index
    %147 = vector.load %arg12[%c0_78, %c0_79] : memref<1x128xf32, #tpu.memory_space<vmem>>, vector<1x128xf32>
    %c0_80 = arith.constant 0 : index
    %c0_81 = arith.constant 0 : index
    %148 = vector.load %arg13[%c0_80, %c0_81] : memref<1x128xf32, #tpu.memory_space<vmem>>, vector<1x128xf32>
    %cst_82 = arith.constant dense<0.000000e+00> : vector<16xf32>
    %149 = vector.multi_reduction <add>, %146, %cst_82 [1] : vector<16x128xf32> to vector<16xf32>
    %150 = vector.shape_cast %149 : vector<16xf32> to vector<16x1xf32>
    %cst_83 = arith.constant 1.280000e+02 : f32
    %151 = vector.broadcast %cst_83 : f32 to vector<16x1xf32>
    %152 = arith.divf %150, %151 : vector<16x1xf32>
    %153 = vector.broadcast %152 : vector<16x1xf32> to vector<16x128xf32>
    %154 = arith.subf %146, %153 : vector<16x128xf32>
    %155 = arith.mulf %154, %154 : vector<16x128xf32>
    %cst_84 = arith.constant dense<0.000000e+00> : vector<16xf32>
    %156 = vector.multi_reduction <add>, %155, %cst_84 [1] : vector<16x128xf32> to vector<16xf32>
    %157 = vector.shape_cast %156 : vector<16xf32> to vector<16x1xf32>
    %cst_85 = arith.constant 1.280000e+02 : f32
    %158 = vector.broadcast %cst_85 : f32 to vector<16x1xf32>
    %159 = arith.divf %157, %158 : vector<16x1xf32>
    %160 = vector.broadcast %152 : vector<16x1xf32> to vector<16x128xf32>
    %161 = arith.subf %146, %160 : vector<16x128xf32>
    %cst_86 = arith.constant 9.99999974E-6 : f32
    %162 = vector.broadcast %cst_86 : f32 to vector<16x1xf32>
    %163 = arith.addf %159, %162 : vector<16x1xf32>
    %164 = math.rsqrt %163 : vector<16x1xf32>
    %165 = vector.broadcast %164 : vector<16x1xf32> to vector<16x128xf32>
    %166 = arith.mulf %161, %165 : vector<16x128xf32>
    %167 = vector.broadcast %147 : vector<1x128xf32> to vector<16x128xf32>
    %168 = arith.mulf %166, %167 : vector<16x128xf32>
    %169 = vector.broadcast %148 : vector<1x128xf32> to vector<16x128xf32>
    %170 = arith.addf %168, %169 : vector<16x128xf32>
    %cst_87 = arith.constant 0.000000e+00 : f32
    %171 = vector.broadcast %cst_87 : f32 to vector<16x128xf32>
    %172 = arith.subf %171, %170 : vector<16x128xf32>
    %173 = math.exp %172 : vector<16x128xf32>
    %cst_88 = arith.constant 1.000000e+00 : f32
    %174 = vector.broadcast %cst_88 : f32 to vector<16x128xf32>
    %175 = arith.addf %174, %173 : vector<16x128xf32>
    %cst_89 = arith.constant 1.000000e+00 : f32
    %176 = vector.broadcast %cst_89 : f32 to vector<16x128xf32>
    %177 = arith.divf %176, %175 : vector<16x128xf32>
    %178 = arith.mulf %170, %177 : vector<16x128xf32>
    %179 = arith.truncf %178 : vector<16x128xf32> to vector<16x128xbf16>
    %c0_90 = arith.constant 0 : index
    %c0_91 = arith.constant 0 : index
    %180 = vector.load %arg14[%c0_90, %c0_91] : memref<128x128xbf16, #tpu.memory_space<vmem>>, vector<128x128xbf16>
    %cst_92 = arith.constant dense<0.000000e+00> : vector<16x128xf32>
    %181 = tpu.matmul %179, %180, %cst_92 {dimension_numbers = #tpu.dot_dimension_numbers<[1], [0], [0], [1], [0, 0, 1, 1], [], []>} : vector<16x128xbf16>, vector<128x128xbf16>, vector<16x128xf32> -> vector<16x128xf32>
    %c0_93 = arith.constant 0 : index
    %c0_94 = arith.constant 0 : index
    %182 = vector.load %arg15[%c0_93, %c0_94] : memref<1x128xf32, #tpu.memory_space<vmem>>, vector<1x128xf32>
    %183 = vector.broadcast %182 : vector<1x128xf32> to vector<16x128xf32>
    %184 = arith.addf %181, %183 : vector<16x128xf32>
    %c0_95 = arith.constant 0 : index
    %c0_96 = arith.constant 0 : index
    %c0_97 = arith.constant 0 : index
    %185 = vector.load %arg3[%c0_95, %c0_96, %c0_97] : memref<1x16x1xf32, #tpu.memory_space<vmem>>, vector<1x16x1xf32>
    %186 = vector.shape_cast %185 : vector<1x16x1xf32> to vector<16x1xf32>
    %187 = vector.broadcast %186 : vector<16x1xf32> to vector<16x128xf32>
    %188 = arith.mulf %184, %187 : vector<16x128xf32>
    %c0_98 = arith.constant 0 : index
    %c0_99 = arith.constant 0 : index
    %c0_100 = arith.constant 0 : index
    %189 = vector.load %arg16[%c0_98, %c0_99, %c0_100] : memref<1x16x128xf32, #tpu.memory_space<vmem>>, vector<1x16x128xf32>
    %190 = vector.shape_cast %189 : vector<1x16x128xf32> to vector<16x128xf32>
    %191 = vector.shape_cast %188 : vector<16x128xf32> to vector<1x16x128xf32>
    tpu.vector_store %arg16[%c0_98, %c0_99, %c0_100], %191 {strides = array<i32>} : memref<1x16x128xf32, #tpu.memory_space<vmem>>, vector<1x16x128xf32>,
    return
  }
  func.func @transform_1(%arg0: i32, %arg1: i32) -> (i32, i32, i32) {
    %c0_i32 = arith.constant 0 : i32
    %c0_i32_0 = arith.constant 0 : i32
    return %arg0, %arg1, %c0_i32 : i32, i32, i32
  }
  func.func @transform_2(%arg0: i32, %arg1: i32) -> (i32, i32) {
    %c0_i32 = arith.constant 0 : i32
    %c0_i32_0 = arith.constant 0 : i32
    %c0_i32_1 = arith.constant 0 : i32
    return %c0_i32, %c0_i32_0 : i32, i32
  }
  func.func @transform_3(%arg0: i32, %arg1: i32) -> (i32, i32) {
    %c0_i32 = arith.constant 0 : i32
    %c0_i32_0 = arith.constant 0 : i32
    %c0_i32_1 = arith.constant 0 : i32
    return %c0_i32, %c0_i32_0 : i32, i32
  }
  func.func @transform_4(%arg0: i32, %arg1: i32) -> (i32, i32) {
    %c0_i32 = arith.constant 0 : i32
    %c0_i32_0 = arith.constant 0 : i32
    %c0_i32_1 = arith.constant 0 : i32
    return %c0_i32, %c0_i32_0 : i32, i32
  }
  func.func @transform_5(%arg0: i32, %arg1: i32) -> (i32, i32) {
    %c0_i32 = arith.constant 0 : i32
    %c0_i32_0 = arith.constant 0 : i32
    %c0_i32_1 = arith.constant 0 : i32
    return %c0_i32, %c0_i32_0 : i32, i32
  }
  func.func @transform_6(%arg0: i32, %arg1: i32) -> (i32, i32) {
    %c0_i32 = arith.constant 0 : i32
    %c0_i32_0 = arith.constant 0 : i32
    %c0_i32_1 = arith.constant 0 : i32
    return %c0_i32, %c0_i32_0 : i32, i32
  }
  func.func @transform_7(%arg0: i32, %arg1: i32) -> (i32, i32) {
    %c0_i32 = arith.constant 0 : i32
    %c0_i32_0 = arith.constant 0 : i32
    %c0_i32_1 = arith.constant 0 : i32
    return %c0_i32, %c0_i32_0 : i32, i32
  }
  func.func @transform_8(%arg0: i32, %arg1: i32) -> (i32, i32) {
    %c0_i32 = arith.constant 0 : i32
    %c0_i32_0 = arith.constant 0 : i32
    %c0_i32_1 = arith.constant 0 : i32
    return %c0_i32, %c0_i32_0 : i32, i32
  }
  func.func @transform_9(%arg0: i32, %arg1: i32) -> (i32, i32) {
    %c0_i32 = arith.constant 0 : i32
    %c0_i32_0 = arith.constant 0 : i32
    %c0_i32_1 = arith.constant 0 : i32
    return %c0_i32, %c0_i32_0 : i32, i32
  }
  func.func @transform_10(%arg0: i32, %arg1: i32) -> (i32, i32) {
    %c0_i32 = arith.constant 0 : i32
    %c0_i32_0 = arith.constant 0 : i32
    %c0_i32_1 = arith.constant 0 : i32
    return %c0_i32, %c0_i32_0 : i32, i32
  }
  func.func @transform_11(%arg0: i32, %arg1: i32) -> (i32, i32) {
    %c0_i32 = arith.constant 0 : i32
    %c0_i32_0 = arith.constant 0 : i32
    %c0_i32_1 = arith.constant 0 : i32
    return %c0_i32, %c0_i32_0 : i32, i32
  }
  func.func @transform_12(%arg0: i32, %arg1: i32) -> (i32, i32) {
    %c0_i32 = arith.constant 0 : i32
    %c0_i32_0 = arith.constant 0 : i32
    %c0_i32_1 = arith.constant 0 : i32
    return %c0_i32, %c0_i32_0 : i32, i32
  }
  func.func @transform_13(%arg0: i32, %arg1: i32) -> (i32, i32) {
    %c0_i32 = arith.constant 0 : i32
    %c0_i32_0 = arith.constant 0 : i32
    %c0_i32_1 = arith.constant 0 : i32
    return %c0_i32, %c0_i32_0 : i32, i32
  }
  func.func @transform_14(%arg0: i32, %arg1: i32) -> (i32, i32, i32) {
    %c0_i32 = arith.constant 0 : i32
    %c0_i32_0 = arith.constant 0 : i32
    return %arg0, %arg1, %c0_i32 : i32, i32, i32
  }
}

</mosaic_0001>

<llo_original>
// kernel: tpu_custom_call.1
$region0: #{tpu_custom_call.1}
  #allocation0 [shape = 'u32[]', space=smem, size = 0x4, offset = 0x4, fixed_abs, tag = 'smem constant byte address 0x4 - core index']
  #allocation1 [shape = 'u32[144,128]{1,0:T(1,128)}', space=vmem, size = 0x12000, scoped, tag = 'internal scratch']
  #allocation2 [shape = 'f32[30,128]{1,0:T(8,128)}', space=vmem, size = 0x4000, scoped, tag = 'scratch operand']
  #allocation3 [shape = 'f32[30,128]{1,0:T(8,128)}', space=vmem, size = 0x4000, scoped, tag = 'scratch operand']
  #allocation4 [shape = 's32[1]{0}', space=sflag, size = 0x4, scoped, tag = 'scratch operand']
  #allocation7 [shape = 's32[]', space=sflag, size = 0x4, offset = 0, fixed_abs, tag = 'sflag constant byte address 0x0 - dummy sync flag']
  %s0 = inlined_call_operand.vmem [shape: f32[2,46,128], index: 0, kind: input, shape index: {}]
  %s1 = inlined_call_operand.vmem [shape: f32[2,32,1], index: 1, kind: input, shape index: {}]
  %s2 = inlined_call_operand.vmem [shape: f32[1,128], index: 2, kind: input, shape index: {}]
  %s3 = inlined_call_operand.vmem [shape: f32[1,128], index: 3, kind: input, shape index: {}]
  %s4 = inlined_call_operand.vmem [shape: bf16[128,128], index: 4, kind: input, shape index: {}]
  %s5 = inlined_call_operand.vmem [shape: f32[1,128], index: 5, kind: input, shape index: {}]
  %s6 = inlined_call_operand.vmem [shape: bf16[128,128], index: 6, kind: input, shape index: {}]
  %s7 = inlined_call_operand.vmem [shape: f32[1,128], index: 7, kind: input, shape index: {}]
  %s8 = inlined_call_operand.vmem [shape: f32[15,128], index: 8, kind: input, shape index: {}]
  %s9 = inlined_call_operand.vmem [shape: f32[1,128], index: 9, kind: input, shape index: {}]
  %s10 = inlined_call_operand.vmem [shape: f32[1,128], index: 10, kind: input, shape index: {}]
  %s11 = inlined_call_operand.vmem [shape: f32[1,128], index: 11, kind: input, shape index: {}]
  %s12 = inlined_call_operand.vmem [shape: bf16[128,128], index: 12, kind: input, shape index: {}]
  %s13 = inlined_call_operand.vmem [shape: f32[1,128], index: 13, kind: input, shape index: {}]
  %s14 = inlined_call_operand.hbm [shape: f32[2,32,128], index: 14, kind: output, shape index: {}]
  %s15 = sld [smem:[#allocation0]]
  $region122: #{tpu_custom_call.1} parent=0
    _
  %s17 = ssub.s32 1, %s15
  %s18 = scalar_select 0, %s17, %s15
  $region1: #{tpu_custom_call.1} parent=0
    #allocation5 [shape = 'u8[16384]{0}', space=vmem, size = 0x4000, scoped, tag = 'output window, operand 0']
    #allocation6 [shape = 's32[2]{0}', space=sflag, size = 0x8, scoped, tag = 'scoped memory for tpu_custom_call.1']
    %19 = vsyncpa [#allocation6], 0
    %s20 = scalar_lea.sflag [#allocation6], 1
    %21 = vsyncpa %s20, 0
    loop: start=0, step=1, limit=6
    $region2: #{tpu_custom_call.1} parent=1 // loop_pre_header
      _
    $region3: #{tpu_custom_call.1} parent=1 // loop_header
      %s23 = sphi 0, %s27
      %p24 = scmp.ge.s32.totalorder %s23, 6
      %s30 = sphi 0, %s42
      %s31 = sphi 0, %s38
      %s32 = sphi 0, %s30
      %s33 = sphi 0, %s31
      %s34 = sphi 0, %s32
      %s35 = sphi 0, %s33
      %s47 = sphi 0, %s49
      %s50 = sphi 0, %s47
      %s51 = sphi 0, %s50
      %s67 = sphi 0, %s51
      %s71 = sphi 0, %s71
      %s73 = sphi 0, %s71
      %s74 = sphi 0, %s73
      %s88 = sphi 0, %s74
      %s92 = sphi 0, %s92
      %s94 = sphi 0, %s92
      %s95 = sphi 0, %s94
      %s109 = sphi 0, %s95
      %s113 = sphi 0, %s113
      %s115 = sphi 0, %s113
      %s116 = sphi 0, %s115
      %s130 = sphi 0, %s116
      %s134 = sphi 0, %s134
      %s136 = sphi 0, %s134
      %s137 = sphi 0, %s136
      %s151 = sphi 0, %s137
      %s155 = sphi 0, %s155
      %s157 = sphi 0, %s155
      %s158 = sphi 0, %s157
      %s172 = sphi 0, %s158
      %s176 = sphi 0, %s176
      %s178 = sphi 0, %s176
      %s179 = sphi 0, %s178
      %s193 = sphi 0, %s179
      %s197 = sphi 0, %s197
      %s199 = sphi 0, %s197
      %s200 = sphi 0, %s199
      %s214 = sphi 0, %s200
      %s218 = sphi 0, %s218
      %s220 = sphi 0, %s218
      %s221 = sphi 0, %s220
      %s235 = sphi 0, %s221
      %s239 = sphi 0, %s239
      %s241 = sphi 0, %s239
      %s242 = sphi 0, %s241
      %s256 = sphi 0, %s242
      %s260 = sphi 0, %s260
      %s262 = sphi 0, %s260
      %s263 = sphi 0, %s262
      %s277 = sphi 0, %s263
      %s281 = sphi 0, %s281
      %s283 = sphi 0, %s281
      %s284 = sphi 0, %s283
      %s298 = sphi 0, %s284
      %s302 = sphi 0, %s302
      %s304 = sphi 0, %s302
      %s305 = sphi 0, %s304
      %s319 = sphi 0, %s305
      %s327 = sphi 0, %s329
      %s330 = sphi 0, %s327
      %s331 = sphi 0, %s330
      %s347 = sphi 0, %s331
    $region4: #{tpu_custom_call.1} parent=1 // loop_header_branch
      %26 = sbr.rel (%p24) target = $region8
    $region5: #{tpu_custom_call.1} parent=1 // loop_body
      %s28 = ssub.s32 %s23, 1
      %s29 = ssub.s32 %s23, 2
      %s36 = sadd.s32 1, %s31
      %p37 = scmp.ge.s32.totalorder %s36, 2
      %s38 = scalar_select %p37, 0, %s36
      %s39 = sadd.s32 1, %s30
      %s40 = scalar_select %p37, %s39, %s30
      %p41 = scmp.ge.s32.totalorder %s40, 2
      %s42 = scalar_select %p41, 0, %s40
      %s43 = ssub.s32 %s30, %s42
      %s44 = ssub.s32 %s31, %s38
      %s45 = sor.u32 %s43, %s44
      %p46 = scmp.eq.s32.totalorder %s45, 0
      %s48 = sadd.s32 %s47, 1
      %s49 = scalar_select %p46, %s47, %s48
      %p52 = pneg %p46
      %p53 = scmp.eq.s32.totalorder %s23, 3
      %p54 = por %p52, %p53
      %p55 = scmp.ne.s32.totalorder %s47, %s50
      %p56 = scmp.eq.s32.totalorder %s23, 0
      %p57 = por %p55, %p56
      %p58 = scmp.ne.s32.totalorder %s47, %s50
      %p59 = scmp.eq.s32.totalorder %s28, 3
      %p60 = por %p58, %p59
      %p61 = scmp.ne.s32.totalorder %s50, %s51
      %p62 = scmp.eq.s32.totalorder %s28, 0
      %p63 = por %p61, %p62
      %p64 = scmp.ne.s32.totalorder %s50, %s51
      %p65 = scmp.eq.s32.totalorder %s29, 3
      %p66 = por %p64, %p65
      %p68 = scmp.ne.s32.totalorder %s51, %s67
      %p69 = scmp.eq.s32.totalorder %s29, 0
      %p70 = por %p68, %p69
      %s72 = sadd.s32 %s71, 1
      %p75 = scmp.eq.s32.totalorder %s23, 3
      %p76 = scmp.ne.s32.totalorder %s71, %s73
      %p77 = scmp.eq.s32.totalorder %s23, 0
      %p78 = por %p76, %p77
      %p79 = scmp.ne.s32.totalorder %s71, %s73
      %p80 = scmp.eq.s32.totalorder %s28, 3
      %p81 = por %p79, %p80
      %p82 = scmp.ne.s32.totalorder %s73, %s74
      %p83 = scmp.eq.s32.totalorder %s28, 0
      %p84 = por %p82, %p83
      %p85 = scmp.ne.s32.totalorder %s73, %s74
      %p86 = scmp.eq.s32.totalorder %s29, 3
      %p87 = por %p85, %p86
      %p89 = scmp.ne.s32.totalorder %s74, %s88
      %p90 = scmp.eq.s32.totalorder %s29, 0
      %p91 = por %p89, %p90
      %s93 = sadd.s32 %s92, 1
      %p96 = scmp.eq.s32.totalorder %s23, 3
      %p97 = scmp.ne.s32.totalorder %s92, %s94
      %p98 = scmp.eq.s32.totalorder %s23, 0
      %p99 = por %p97, %p98
      %p100 = scmp.ne.s32.totalorder %s92, %s94
      %p101 = scmp.eq.s32.totalorder %s28, 3
      %p102 = por %p100, %p101
      %p103 = scmp.ne.s32.totalorder %s94, %s95
      %p104 = scmp.eq.s32.totalorder %s28, 0
      %p105 = por %p103, %p104
      %p106 = scmp.ne.s32.totalorder %s94, %s95
      %p107 = scmp.eq.s32.totalorder %s29, 3
      %p108 = por %p106, %p107
      %p110 = scmp.ne.s32.totalorder %s95, %s109
      %p111 = scmp.eq.s32.totalorder %s29, 0
      %p112 = por %p110, %p111
      %s114 = sadd.s32 %s113, 1
      %p117 = scmp.eq.s32.totalorder %s23, 3
      %p118 = scmp.ne.s32.totalorder %s113, %s115
      %p119 = scmp.eq.s32.totalorder %s23, 0
      %p120 = por %p118, %p119
      %p121 = scmp.ne.s32.totalorder %s113, %s115
      %p122 = scmp.eq.s32.totalorder %s28, 3
      %p123 = por %p121, %p122
      %p124 = scmp.ne.s32.totalorder %s115, %s116
      %p125 = scmp.eq.s32.totalorder %s28, 0
      %p126 = por %p124, %p125
      %p127 = scmp.ne.s32.totalorder %s115, %s116
      %p128 = scmp.eq.s32.totalorder %s29, 3
      %p129 = por %p127, %p128
      %p131 = scmp.ne.s32.totalorder %s116, %s130
      %p132 = scmp.eq.s32.totalorder %s29, 0
      %p133 = por %p131, %p132
      %s135 = sadd.s32 %s134, 1
      %p138 = scmp.eq.s32.totalorder %s23, 3
      %p139 = scmp.ne.s32.totalorder %s134, %s136
      %p140 = scmp.eq.s32.totalorder %s23, 0
      %p141 = por %p139, %p140
      %p142 = scmp.ne.s32.totalorder %s134, %s136
      %p143 = scmp.eq.s32.totalorder %s28, 3
      %p144 = por %p142, %p143
      %p145 = scmp.ne.s32.totalorder %s136, %s137
      %p146 = scmp.eq.s32.totalorder %s28, 0
      %p147 = por %p145, %p146
      %p148 = scmp.ne.s32.totalorder %s136, %s137
      %p149 = scmp.eq.s32.totalorder %s29, 3
      %p150 = por %p148, %p149
      %p152 = scmp.ne.s32.totalorder %s137, %s151
      %p153 = scmp.eq.s32.totalorder %s29, 0
      %p154 = por %p152, %p153
      %s156 = sadd.s32 %s155, 1
      %p159 = scmp.eq.s32.totalorder %s23, 3
      %p160 = scmp.ne.s32.totalorder %s155, %s157
      %p161 = scmp.eq.s32.totalorder %s23, 0
      %p162 = por %p160, %p161
      %p163 = scmp.ne.s32.totalorder %s155, %s157
      %p164 = scmp.eq.s32.totalorder %s28, 3
      %p165 = por %p163, %p164
      %p166 = scmp.ne.s32.totalorder %s157, %s158
      %p167 = scmp.eq.s32.totalorder %s28, 0
      %p168 = por %p166, %p167
      %p169 = scmp.ne.s32.totalorder %s157, %s158
      %p170 = scmp.eq.s32.totalorder %s29, 3
      %p171 = por %p169, %p170
      %p173 = scmp.ne.s32.totalorder %s158, %s172
      %p174 = scmp.eq.s32.totalorder %s29, 0
      %p175 = por %p173, %p174
      %s177 = sadd.s32 %s176, 1
      %p180 = scmp.eq.s32.totalorder %s23, 3
      %p181 = scmp.ne.s32.totalorder %s176, %s178
      %p182 = scmp.eq.s32.totalorder %s23, 0
      %p183 = por %p181, %p182
      %p184 = scmp.ne.s32.totalorder %s176, %s178
      %p185 = scmp.eq.s32.totalorder %s28, 3
      %p186 = por %p184, %p185
      %p187 = scmp.ne.s32.totalorder %s178, %s179
      %p188 = scmp.eq.s32.totalorder %s28, 0
      %p189 = por %p187, %p188
      %p190 = scmp.ne.s32.totalorder %s178, %s179
      %p191 = scmp.eq.s32.totalorder %s29, 3
      %p192 = por %p190, %p191
      %p194 = scmp.ne.s32.totalorder %s179, %s193
      %p195 = scmp.eq.s32.totalorder %s29, 0
      %p196 = por %p194, %p195
      %s198 = sadd.s32 %s197, 1
      %p201 = scmp.eq.s32.totalorder %s23, 3
      %p202 = scmp.ne.s32.totalorder %s197, %s199
      %p203 = scmp.eq.s32.totalorder %s23, 0
      %p204 = por %p202, %p203
      %p205 = scmp.ne.s32.totalorder %s197, %s199
      %p206 = scmp.eq.s32.totalorder %s28, 3
      %p207 = por %p205, %p206
      %p208 = scmp.ne.s32.totalorder %s199, %s200
      %p209 = scmp.eq.s32.totalorder %s28, 0
      %p210 = por %p208, %p209
      %p211 = scmp.ne.s32.totalorder %s199, %s200
      %p212 = scmp.eq.s32.totalorder %s29, 3
      %p213 = por %p211, %p212
      %p215 = scmp.ne.s32.totalorder %s200, %s214
      %p216 = scmp.eq.s32.totalorder %s29, 0
      %p217 = por %p215, %p216
      %s219 = sadd.s32 %s218, 1
      %p222 = scmp.eq.s32.totalorder %s23, 3
      %p223 = scmp.ne.s32.totalorder %s218, %s220
      %p224 = scmp.eq.s32.totalorder %s23, 0
      %p225 = por %p223, %p224
      %p226 = scmp.ne.s32.totalorder %s218, %s220
      %p227 = scmp.eq.s32.totalorder %s28, 3
      %p228 = por %p226, %p227
      %p229 = scmp.ne.s32.totalorder %s220, %s221
      %p230 = scmp.eq.s32.totalorder %s28, 0
      %p231 = por %p229, %p230
      %p232 = scmp.ne.s32.totalorder %s220, %s221
      %p233 = scmp.eq.s32.totalorder %s29, 3
      %p234 = por %p232, %p233
      %p236 = scmp.ne.s32.totalorder %s221, %s235
      %p237 = scmp.eq.s32.totalorder %s29, 0
      %p238 = por %p236, %p237
      %s240 = sadd.s32 %s239, 1
      %p243 = scmp.eq.s32.totalorder %s23, 3
      %p244 = scmp.ne.s32.totalorder %s239, %s241
      %p245 = scmp.eq.s32.totalorder %s23, 0
      %p246 = por %p244, %p245
      %p247 = scmp.ne.s32.totalorder %s239, %s241
      %p248 = scmp.eq.s32.totalorder %s28, 3
      %p249 = por %p247, %p248
      %p250 = scmp.ne.s32.totalorder %s241, %s242
      %p251 = scmp.eq.s32.totalorder %s28, 0
      %p252 = por %p250, %p251
      %p253 = scmp.ne.s32.totalorder %s241, %s242
      %p254 = scmp.eq.s32.totalorder %s29, 3
      %p255 = por %p253, %p254
      %p257 = scmp.ne.s32.totalorder %s242, %s256
      %p258 = scmp.eq.s32.totalorder %s29, 0
      %p259 = por %p257, %p258
      %s261 = sadd.s32 %s260, 1
      %p264 = scmp.eq.s32.totalorder %s23, 3
      %p265 = scmp.ne.s32.totalorder %s260, %s262
      %p266 = scmp.eq.s32.totalorder %s23, 0
      %p267 = por %p265, %p266
      %p268 = scmp.ne.s32.totalorder %s260, %s262
      %p269 = scmp.eq.s32.totalorder %s28, 3
      %p270 = por %p268, %p269
      %p271 = scmp.ne.s32.totalorder %s262, %s263
      %p272 = scmp.eq.s32.totalorder %s28, 0
      %p273 = por %p271, %p272
      %p274 = scmp.ne.s32.totalorder %s262, %s263
      %p275 = scmp.eq.s32.totalorder %s29, 3
      %p276 = por %p274, %p275
      %p278 = scmp.ne.s32.totalorder %s263, %s277
      %p279 = scmp.eq.s32.totalorder %s29, 0
      %p280 = por %p278, %p279
      %s282 = sadd.s32 %s281, 1
      %p285 = scmp.eq.s32.totalorder %s23, 3
      %p286 = scmp.ne.s32.totalorder %s281, %s283
      %p287 = scmp.eq.s32.totalorder %s23, 0
      %p288 = por %p286, %p287
      %p289 = scmp.ne.s32.totalorder %s281, %s283
      %p290 = scmp.eq.s32.totalorder %s28, 3
      %p291 = por %p289, %p290
      %p292 = scmp.ne.s32.totalorder %s283, %s284
      %p293 = scmp.eq.s32.totalorder %s28, 0
      %p294 = por %p292, %p293
      %p295 = scmp.ne.s32.totalorder %s283, %s284
      %p296 = scmp.eq.s32.totalorder %s29, 3
      %p297 = por %p295, %p296
      %p299 = scmp.ne.s32.totalorder %s284, %s298
      %p300 = scmp.eq.s32.totalorder %s29, 0
      %p301 = por %p299, %p300
      %s303 = sadd.s32 %s302, 1
      %p306 = scmp.eq.s32.totalorder %s23, 3
      %p307 = scmp.ne.s32.totalorder %s302, %s304
      %p308 = scmp.eq.s32.totalorder %s23, 0
      %p309 = por %p307, %p308
      %p310 = scmp.ne.s32.totalorder %s302, %s304
      %p311 = scmp.eq.s32.totalorder %s28, 3
      %p312 = por %p310, %p311
      %p313 = scmp.ne.s32.totalorder %s304, %s305
      %p314 = scmp.eq.s32.totalorder %s28, 0
      %p315 = por %p313, %p314
      %p316 = scmp.ne.s32.totalorder %s304, %s305
      %p317 = scmp.eq.s32.totalorder %s29, 3
      %p318 = por %p316, %p317
      %p320 = scmp.ne.s32.totalorder %s305, %s319
      %p321 = scmp.eq.s32.totalorder %s29, 0
      %p322 = por %p320, %p321
      %s323 = ssub.s32 %s30, %s42
      %s324 = ssub.s32 %s31, %s38
      %s325 = sor.u32 %s323, %s324
      %p326 = scmp.eq.s32.totalorder %s325, 0
      %s328 = sadd.s32 %s327, 1
      %s329 = scalar_select %p326, %s327, %s328
      %p332 = pneg %p326
      %p333 = scmp.eq.s32.totalorder %s23, 3
      %p334 = por %p332, %p333
      %p335 = scmp.ne.s32.totalorder %s327, %s330
      %p336 = scmp.eq.s32.totalorder %s23, 0
      %p337 = por %p335, %p336
      %p338 = scmp.ne.s32.totalorder %s327, %s330
      %p339 = scmp.eq.s32.totalorder %s28, 3
      %p340 = por %p338, %p339
      %p341 = scmp.ne.s32.totalorder %s330, %s331
      %p342 = scmp.eq.s32.totalorder %s28, 0
      %p343 = por %p341, %p342
      %p344 = scmp.ne.s32.totalorder %s330, %s331
      %p345 = scmp.eq.s32.totalorder %s29, 3
      %p346 = por %p344, %p345
      %p348 = scmp.ne.s32.totalorder %s331, %s347
      %p349 = scmp.eq.s32.totalorder %s29, 0
      %p350 = por %p348, %p349
      %p351 = scmp.le.s32.totalorder 1, %s23
      %p352 = scmp.lt.s32.totalorder %s23, 5
      %p353 = pnand %p351, %p352
      %p354 = pneg %p353
      // Predicated region
      $region9: #{tpu_custom_call.1} parent=5 // pred_check
        _
      $region10: #{tpu_custom_call.1} parent=5 // pred_check_branch
        %356 = sbr.rel (%p353) target = $region12
      $region11: #{tpu_custom_call.1} parent=5 // pred_region
        %s357 = ssub.s32 %s23, 1
        // Predicated region
        $region13: #{tpu_custom_call.1} parent=11 // pred_check
          %p358 = pneg %p84
        $region14: #{tpu_custom_call.1} parent=11 // pred_check_branch
          %360 = sbr.rel (%p358) target = $region16
        $region15: #{tpu_custom_call.1} parent=11 // pred_region
          _
        $region16: #{tpu_custom_call.1} parent=11 // pred_fallthru
          _
        // Predicated region
        $region17: #{tpu_custom_call.1} parent=11 // pred_check
          %p361 = pneg %p105
        $region18: #{tpu_custom_call.1} parent=11 // pred_check_branch
          %363 = sbr.rel (%p361) target = $region20
        $region19: #{tpu_custom_call.1} parent=11 // pred_region
          _
        $region20: #{tpu_custom_call.1} parent=11 // pred_fallthru
          _
        // Predicated region
        $region21: #{tpu_custom_call.1} parent=11 // pred_check
          %p364 = pneg %p126
        $region22: #{tpu_custom_call.1} parent=11 // pred_check_branch
          %366 = sbr.rel (%p364) target = $region24
        $region23: #{tpu_custom_call.1} parent=11 // pred_region
          _
        $region24: #{tpu_custom_call.1} parent=11 // pred_fallthru
          _
        // Predicated region
        $region25: #{tpu_custom_call.1} parent=11 // pred_check
          %p367 = pneg %p147
        $region26: #{tpu_custom_call.1} parent=11 // pred_check_branch
          %369 = sbr.rel (%p367) target = $region28
        $region27: #{tpu_custom_call.1} parent=11 // pred_region
          _
        $region28: #{tpu_custom_call.1} parent=11 // pred_fallthru
          _
        // Predicated region
        $region29: #{tpu_custom_call.1} parent=11 // pred_check
          %p370 = pneg %p168
        $region30: #{tpu_custom_call.1} parent=11 // pred_check_branch
          %372 = sbr.rel (%p370) target = $region32
        $region31: #{tpu_custom_call.1} parent=11 // pred_region
          _
        $region32: #{tpu_custom_call.1} parent=11 // pred_fallthru
          _
        // Predicated region
        $region33: #{tpu_custom_call.1} parent=11 // pred_check
          %p373 = pneg %p189
        $region34: #{tpu_custom_call.1} parent=11 // pred_check_branch
          %375 = sbr.rel (%p373) target = $region36
        $region35: #{tpu_custom_call.1} parent=11 // pred_region
          _
        $region36: #{tpu_custom_call.1} parent=11 // pred_fallthru
          _
        // Predicated region
        $region37: #{tpu_custom_call.1} parent=11 // pred_check
          %p376 = pneg %p210
        $region38: #{tpu_custom_call.1} parent=11 // pred_check_branch
          %378 = sbr.rel (%p376) target = $region40
        $region39: #{tpu_custom_call.1} parent=11 // pred_region
          _
        $region40: #{tpu_custom_call.1} parent=11 // pred_fallthru
          _
        // Predicated region
        $region41: #{tpu_custom_call.1} parent=11 // pred_check
          %p379 = pneg %p231
        $region42: #{tpu_custom_call.1} parent=11 // pred_check_branch
          %381 = sbr.rel (%p379) target = $region44
        $region43: #{tpu_custom_call.1} parent=11 // pred_region
          _
        $region44: #{tpu_custom_call.1} parent=11 // pred_fallthru
          _
        // Predicated region
        $region45: #{tpu_custom_call.1} parent=11 // pred_check
          %p382 = pneg %p252
        $region46: #{tpu_custom_call.1} parent=11 // pred_check_branch
          %384 = sbr.rel (%p382) target = $region48
        $region47: #{tpu_custom_call.1} parent=11 // pred_region
          _
        $region48: #{tpu_custom_call.1} parent=11 // pred_fallthru
          _
        // Predicated region
        $region49: #{tpu_custom_call.1} parent=11 // pred_check
          %p385 = pneg %p273
        $region50: #{tpu_custom_call.1} parent=11 // pred_check_branch
          %387 = sbr.rel (%p385) target = $region52
        $region51: #{tpu_custom_call.1} parent=11 // pred_region
          _
        $region52: #{tpu_custom_call.1} parent=11 // pred_fallthru
          _
        // Predicated region
        $region53: #{tpu_custom_call.1} parent=11 // pred_check
          %p388 = pneg %p294
        $region54: #{tpu_custom_call.1} parent=11 // pred_check_branch
          %390 = sbr.rel (%p388) target = $region56
        $region55: #{tpu_custom_call.1} parent=11 // pred_region
          _
        $region56: #{tpu_custom_call.1} parent=11 // pred_fallthru
          _
        // Predicated region
        $region57: #{tpu_custom_call.1} parent=11 // pred_check
          %p391 = pneg %p315
        $region58: #{tpu_custom_call.1} parent=11 // pred_check_branch
          %393 = sbr.rel (%p391) target = $region60
        $region59: #{tpu_custom_call.1} parent=11 // pred_region
          _
        $region60: #{tpu_custom_call.1} parent=11 // pred_fallthru
          _
      $region12: #{tpu_custom_call.1} parent=5 // pred_fallthru
        _
      %p394 = scmp.lt.s32.totalorder %s23, 4
      // Predicated region
      $region61: #{tpu_custom_call.1} parent=5 // pred_check
        %p395 = pneg %p394
      $region62: #{tpu_custom_call.1} parent=5 // pred_check_branch
        %397 = sbr.rel (%p395) target = $region64
      $region63: #{tpu_custom_call.1} parent=5 // pred_region
        // Predicated region
        $region65: #{tpu_custom_call.1} parent=63 // pred_check
          %p398 = pneg %p57
        $region66: #{tpu_custom_call.1} parent=63 // pred_check_branch
          %400 = sbr.rel (%p398) target = $region68
        $region67: #{tpu_custom_call.1} parent=63 // pred_region
          %s401 = smul.u32 2, %s31
          %p402 = scmp.lt.s32.totalorder %s30, 1
          %s403 = scalar_select %p402, %s30, 1
          %p404 = scmp.lt.s32.totalorder %s401, 3
          %s405 = scalar_select %p404, %s401, 3
          %s406 = smul.addr %s403, 4
          %s407 = sadd.s32 %s405, %s406
          %s408 = smul.addr %s407, 8
          %s409 = scalar_lea.vmem %s1, %s408
          %s410 = smul.u32 2, %s31
        $region68: #{tpu_custom_call.1} parent=63 // pred_fallthru
          _
      $region64: #{tpu_custom_call.1} parent=5 // pred_fallthru
        _
      %p411 = scmp.le.s32.totalorder 1, %s23
      %p412 = scmp.lt.s32.totalorder %s23, 5
      %p413 = pnand %p411, %p412
      %p414 = pneg %p413
      // Predicated region
      $region69: #{tpu_custom_call.1} parent=5 // pred_check
        _
      $region70: #{tpu_custom_call.1} parent=5 // pred_check_branch
        %416 = sbr.rel (%p413) target = $region72
      $region71: #{tpu_custom_call.1} parent=5 // pred_region
        %s417 = ssub.s32 %s23, 1
        %s418 = smul.u32 2, %s33
        %p419 = scmp.lt.s32.totalorder %s32, 1
        %s420 = scalar_select %p419, %s32, 1
        %p421 = scmp.lt.s32.totalorder %s418, 3
        %s422 = scalar_select %p421, %s418, 3
        %s423 = smul.addr %s420, 4
        %s424 = sadd.s32 %s422, %s423
        %s425 = smul.addr %s424, 8
        %s426 = scalar_lea.vmem %s1, %s425
        %p427 = pneg %p63
        %p428 = pneg %p60
        %p429 = pneg %p84
        %p430 = pneg %p81
        %p431 = pneg %p105
        %p432 = pneg %p102
        %p433 = pneg %p126
        %p434 = pneg %p123
        %p435 = pneg %p147
        %p436 = pneg %p144
        %p437 = pneg %p168
        %p438 = pneg %p165
        %p439 = pneg %p189
        %p440 = pneg %p186
        %p441 = pneg %p210
        %p442 = pneg %p207
        %p443 = pneg %p231
        %p444 = pneg %p228
        %p445 = pneg %p252
        %p446 = pneg %p249
        %p447 = pneg %p273
        %p448 = pneg %p270
        %p449 = pneg %p294
        %p450 = pneg %p291
        %p451 = pneg %p315
        %p452 = pneg %p312
        %p453 = pneg %p343
        %p454 = pneg %p340
        %s455 = sand.u32 %s330, 1
        %s456 = scalar_lea.sflag [#allocation6], %s455
        %s457 = sand.u32 %s330, 1
        %s458 = smul.addr %s457, 16
        %s459 = scalar_lea.vmem [#allocation5], %s458
        %s460 = smul.u32 2, %s33
        %p461 = scmp.lt.s32.totalorder %s32, 1
        %s462 = scalar_select %p461, %s32, 1
        %p463 = scmp.lt.s32.totalorder %s460, 3
        %s464 = scalar_select %p463, %s460, 3
        %s465 = smul.addr %s462, 4
        %s466 = sadd.s32 %s464, %s465
        %s467 = smul.addr %s466, 8
        %s468 = scalar_lea.vmem %s1, %s467
        %s469 = smul.u32 2, %s33
        %s470 = smul.u32 2, %s33
        %s472 = smul.u32 %s33, 16
        %s473 = smul.u32 %s32, 48
        %s474 = sadd.s32 %s472, %s473
        %s475 = scalar_lea.vmem %s0, %s474
        %p477 = scmp.lt.u32.totalorder 30, 8
        %p478 = pneg %p477
        // Predicated region
        $region73: #{tpu_custom_call.1} parent=71 // pred_check
          _
        $region74: #{tpu_custom_call.1} parent=71 // pred_check_branch
          %480 = sbr.rel (%p477) target = $region76
        $region75: #{tpu_custom_call.1} parent=71 // pred_region
          %s495 = sand.u32 30, 7
          %p496 = scmp.eq.s32.totalorder %s495, 0
          %p497 = pneg %p496
          // Predicated region
          $region88: #{tpu_custom_call.1} parent=75 // pred_check
            _
          $region89: #{tpu_custom_call.1} parent=75 // pred_check_branch
            %499 = sbr.rel (%p496) target = $region91
          $region90: #{tpu_custom_call.1} parent=75 // pred_region
            %s500 = sand.u32 30, 7
            %s501 = ssub.s32 30, %s500
            %s502 = scalar_lea.vmem %s475, %s501
            %s503 = ssub.s32 30, %s500
            %s504 = scalar_lea.vmem [#allocation2], %s503
            loop: start=0, step=1, limit=1
            $region92: #{tpu_custom_call.1} parent=90 // loop_pre_header
              _
            $region93: #{tpu_custom_call.1} parent=90 // loop_header
              %s506 = sphi 0, %s510
              %p507 = scmp.ge.s32.totalorder %s506, 1
              %s511 = sphi %s475, %s475
              %s512 = sphi [#allocation2], [#allocation2]
            $region94: #{tpu_custom_call.1} parent=90 // loop_header_branch
              %509 = sbr.rel (%p507) target = $region98
            $region95: #{tpu_custom_call.1} parent=90 // loop_body
              %v513 = vld [vmem:[%s511] sm:$0xff]
              %514 = vst [vmem:[%s512] sm:$0xff] %v513
              %v515 = vld [vmem:[%s511 + $0x8] sm:$0xff]
              %516 = vst [vmem:[%s512 + $0x8] sm:$0xff] %v515
              %v517 = vld [vmem:[%s511 + $0x10] sm:$0xff]
              %518 = vst [vmem:[%s512 + $0x10] sm:$0xff] %v517
            $region96: #{tpu_custom_call.1} parent=90 // loop_footer
              %s510 = sadd.s32 1, %s506
            $region97: #{tpu_custom_call.1} parent=90 // loop_footer_branch
              %505 = sbr.rel target = $region93
            $region98: #{tpu_custom_call.1} parent=90 // loop_exit
              _
            %s519 = sshllo.u32 0, %s500
            loop: start=0, step=1, limit=1
            $region99: #{tpu_custom_call.1} parent=90 // loop_pre_header
              _
            $region100: #{tpu_custom_call.1} parent=90 // loop_header
              %s521 = sphi 0, %s525
              %p522 = scmp.ge.s32.totalorder %s521, 1
              %s526 = sphi %s502, %s502
              %s527 = sphi %s504, %s504
            $region101: #{tpu_custom_call.1} parent=90 // loop_header_branch
              %524 = sbr.rel (%p522) target = $region105
            $region102: #{tpu_custom_call.1} parent=90 // loop_body
              %v528 = vld [vmem:[%s526] sm:%s519]
              %529 = vst [vmem:[%s527] sm:%s519] %v528
            $region103: #{tpu_custom_call.1} parent=90 // loop_footer
              %s525 = sadd.s32 1, %s521
            $region104: #{tpu_custom_call.1} parent=90 // loop_footer_branch
              %520 = sbr.rel target = $region100
            $region105: #{tpu_custom_call.1} parent=90 // loop_exit
              _
          $region91: #{tpu_custom_call.1} parent=75 // pred_fallthru
            _
        $region76: #{tpu_custom_call.1} parent=71 // pred_fallthru
          _
        // Predicated region
        $region77: #{tpu_custom_call.1} parent=71 // pred_check
          %p481 = pneg %p477
        $region78: #{tpu_custom_call.1} parent=71 // pred_check_branch
          %483 = sbr.rel (%p481) target = $region80
        $region79: #{tpu_custom_call.1} parent=71 // pred_region
          %s484 = sshllo.u32 0, 30
          loop: start=0, step=1, limit=1
          $region81: #{tpu_custom_call.1} parent=79 // loop_pre_header
            _
          $region82: #{tpu_custom_call.1} parent=79 // loop_header
            %s486 = sphi 0, %s490
            %p487 = scmp.ge.s32.totalorder %s486, 1
            %s491 = sphi %s475, %s475
            %s492 = sphi [#allocation2], [#allocation2]
          $region83: #{tpu_custom_call.1} parent=79 // loop_header_branch
            %489 = sbr.rel (%p487) target = $region87
          $region84: #{tpu_custom_call.1} parent=79 // loop_body
            %v493 = vld [vmem:[%s491] sm:%s484]
            %494 = vst [vmem:[%s492] sm:%s484] %v493
          $region85: #{tpu_custom_call.1} parent=79 // loop_footer
            %s490 = sadd.s32 1, %s486
          $region86: #{tpu_custom_call.1} parent=79 // loop_footer_branch
            %485 = sbr.rel target = $region82
          $region87: #{tpu_custom_call.1} parent=79 // loop_exit
            _
        $region80: #{tpu_custom_call.1} parent=71 // pred_fallthru
          _
        // Predicated region
        $region106: #{tpu_custom_call.1} parent=71 // pred_check
          _
        $region107: #{tpu_custom_call.1} parent=71 // pred_check_branch
          %532 = sbr.rel (0) target = $region109
        $region108: #{tpu_custom_call.1} parent=71 // pred_region
          %533 = vsyncadd [#allocation4], 480
        $region109: #{tpu_custom_call.1} parent=71 // pred_fallthru
          _
        %s534 = smul.u32 30, 1
        %s535 = sshll.u32 %s534, 4
        %536 = dma.done [#allocation4], %s535
        %v537 = vld [vmem:[#allocation2] sm:$0xff]
        %v538 = vld [vmem:[#allocation2 + $0x8] sm:$0xff]
        %v539 = vld [vmem:[#allocation2 + $0x10] sm:$0xff]
        %v540 = vld [vmem:[#allocation2 + $0x18] sm:$0x3f]
        %v541 = vld [vmem:[%s2] sm:$0x1]
        %v542 = vld [vmem:[%s3] sm:$0x1]
        %543 = vadd.xlane.f32.xlu0 %v537
        %v544 = vpop.xlane.xlu0 %543
        %545 = vadd.xlane.f32.xlu0 %v538
        %v546 = vpop.xlane.xlu0 %545
        %547 = vadd.xlane.f32.xlu0 %v539
        %v548 = vpop.xlane.xlu0 %547
        %vm549 = vcmask 1045504
        %v550 = vsel %vm549, %v540, 0.0
        %551 = vadd.xlane.f32.xlu0 %v550
        %v552 = vpop.xlane.xlu0 %551
        %v553 = vrcp.pop 128.0
        %v554 = vmul.f32 %v544, %v553
        %v555 = vmul.f32 %v546, %v553
        %v556 = vmul.f32 %v548, %v553
        %v557 = vmul.f32 %v552, %v553
        %v558 = vsub.f32 %v537, %v554
        %v559 = vsub.f32 %v538, %v555
        %v560 = vsub.f32 %v539, %v556
        %v561 = vsub.f32 %v540, %v557
        %v562 = vmul.f32 %v558, %v558
        %v563 = vmul.f32 %v559, %v559
        %v564 = vmul.f32 %v560, %v560
        %v565 = vmul.f32 %v561, %v561
        %566 = vadd.xlane.f32.xlu0 %v562
        %v567 = vpop.xlane.xlu0 %566
        %568 = vadd.xlane.f32.xlu0 %v563
        %v569 = vpop.xlane.xlu0 %568
        %570 = vadd.xlane.f32.xlu0 %v564
        %v571 = vpop.xlane.xlu0 %570
        %v572 = vsel %vm549, %v565, 0.0
        %573 = vadd.xlane.f32.xlu0 %v572
        %v574 = vpop.xlane.xlu0 %573
        %v575 = vmul.f32 %v567, %v553
        %v576 = vmul.f32 %v569, %v553
        %v577 = vmul.f32 %v571, %v553
        %v578 = vmul.f32 %v574, %v553
        %v579 = vadd.f32 %v575, 1e-05
        %v580 = vadd.f32 %v576, 1e-05
        %v581 = vadd.f32 %v577, 1e-05
        %v582 = vadd.f32 %v578, 1e-05
        %v583 = vrsqrt.pop %v579
        %v584 = vrsqrt.pop %v580
        %v585 = vrsqrt.pop %v581
        %v586 = vrsqrt.pop %v582
        %v587 = vmul.f32 %v558, %v583
        %v588 = vmul.f32 %v559, %v584
        %v589 = vmul.f32 %v560, %v585
        %v590 = vmul.f32 %v561, %v586
        %v592 = vlaneseq
        %v593 = vshrl.u32 %v592, 7
        %v594 = vsub.s32 0, %v593
        %v595 = vrot.slane %v541, %v594
        %v597 = vmul.f32 %v587, %v595
        %v598 = vmul.f32 %v588, %v595
        %v599 = vmul.f32 %v589, %v595
        %v600 = vmul.f32 %v590, %v595
        %v602 = vlaneseq
        %v603 = vshrl.u32 %v602, 7
        %v604 = vsub.s32 0, %v603
        %v605 = vrot.slane %v542, %v604
        %v607 = vadd.f32 %v597, %v605
        %v608 = vadd.f32 %v598, %v605
        %v609 = vadd.f32 %v599, %v605
        %v610 = vadd.f32 %v600, %v605
        %v611 = vpack.c.bf16 %v608, %v607
        %v612 = vpack.c.bf16 %v610, %v609
        %v613 = vld [vmem:[%s4] sm:$0xf]
        %v614 = vld [vmem:[%s4 + $0x4] sm:$0xf]
        %v615 = vld [vmem:[%s4 + $0x8] sm:$0xf]
        %v616 = vld [vmem:[%s4 + $0xc] sm:$0xf]
        %v617 = vld [vmem:[%s4 + $0x10] sm:$0xf]
        %v618 = vld [vmem:[%s4 + $0x14] sm:$0xf]
        %v619 = vld [vmem:[%s4 + $0x18] sm:$0xf]
        %v620 = vld [vmem:[%s4 + $0x1c] sm:$0xf]
        %v621 = vld [vmem:[%s4 + $0x20] sm:$0xf]
        %v622 = vld [vmem:[%s4 + $0x24] sm:$0xf]
        %v623 = vld [vmem:[%s4 + $0x28] sm:$0xf]
        %v624 = vld [vmem:[%s4 + $0x2c] sm:$0xf]
        %v625 = vld [vmem:[%s4 + $0x30] sm:$0xf]
        %v626 = vld [vmem:[%s4 + $0x34] sm:$0xf]
        %v627 = vld [vmem:[%s4 + $0x38] sm:$0xf]
        %v628 = vld [vmem:[%s4 + $0x3c] sm:$0xf]
        %v629 = vld [vmem:[%s5] sm:$0x1]
        %v631 = vlaneseq
        %v632 = vshrl.u32 %v631, 7
        %v633 = vsub.s32 0, %v632
        %v634 = vrot.slane %v629, %v633
        %v652 = vunpack.c.l.b16 %v613
        %v653 = vunpack.c.l.b16 %v614
        %v654 = vunpack.c.l.b16 %v615
        %v655 = vunpack.c.l.b16 %v616
        %v656 = vunpack.c.l.b16 %v617
        %v657 = vunpack.c.l.b16 %v618
        %v658 = vunpack.c.l.b16 %v619
        %v659 = vunpack.c.l.b16 %v620
        %v660 = vunpack.c.l.b16 %v621
        %v661 = vunpack.c.l.b16 %v622
        %v662 = vunpack.c.l.b16 %v623
        %v663 = vunpack.c.l.b16 %v624
        %v664 = vunpack.c.l.b16 %v625
        %v665 = vunpack.c.l.b16 %v626
        %v666 = vunpack.c.l.b16 %v627
        %v667 = vunpack.c.l.b16 %v628
        %v668 = vpack.c.b16 %v653, %v652
        %v669 = vpack.c.b16 %v655, %v654
        %v670 = vpack.c.b16 %v657, %v656
        %v671 = vpack.c.b16 %v659, %v658
        %v672 = vpack.c.b16 %v661, %v660
        %v673 = vpack.c.b16 %v663, %v662
        %v674 = vpack.c.b16 %v665, %v664
        %v675 = vpack.c.b16 %v667, %v666
        %684 = vmatprep.subr.bf16.mxu0 0
        %685 = vmatpush1.bf16.msra.mxu0 %v668
        %686 = vmatprep.subr.bf16.mxu0 0
        %687 = vmatpush1.bf16.msra.mxu0 %v669
        %688 = vmatprep.subr.bf16.mxu0 0
        %689 = vmatpush1.bf16.msra.mxu0 %v670
        %690 = vmatprep.subr.bf16.mxu0 0
        %691 = vmatpush1.bf16.msra.mxu0 %v671
        %692 = vmatprep.subr.bf16.mxu0 0
        %693 = vmatpush1.bf16.msra.mxu0 %v672
        %694 = vmatprep.subr.bf16.mxu0 0
        %695 = vmatpush1.bf16.msra.mxu0 %v673
        %696 = vmatprep.subr.bf16.mxu0 0
        %697 = vmatpush1.bf16.msra.mxu0 %v674
        %698 = vmatprep.subr.bf16.mxu0 0
        %699 = vmatpush1.bf16.msra.mxu0 %v675
        %700 = vmatprep.subr.bf16.mxu0 0
        %701 = vmatpush1.bf16.msra.mxu0 0
        %702 = vmatprep.subr.bf16.mxu0 0
        %703 = vmatpush1.bf16.msra.mxu0 0
        %704 = vmatprep.subr.bf16.mxu0 0
        %705 = vmatpush1.bf16.msra.mxu0 0
        %706 = vmatprep.subr.bf16.mxu0 0
        %707 = vmatpush1.bf16.msra.mxu0 0
        %708 = vmatprep.subr.bf16.mxu0 0
        %709 = vmatpush1.bf16.msra.mxu0 0
        %710 = vmatprep.subr.bf16.mxu0 0
        %711 = vmatpush1.bf16.msra.mxu0 0
        %712 = vmatprep.subr.bf16.mxu0 0
        %713 = vmatpush1.bf16.msra.mxu0 0
        %714 = vmatprep.subr.bf16.mxu0 0
        %715 = vmatpush1.bf16.msra.mxu0 0
        %716 = vmatprep.mubr.bf16.mxu0 0
        %717 = vmatmul.mubr.bf16.gmra.mrb[0].mxu0 %v611
        %v718 = vpop.f32.mrb[0].mxu0
        %v719 = vadd.f32 %v634, %v718
        %v720 = vpop.f32.mrb[0].mxu0
        %v721 = vpop.f32.mrb[0].mxu0
        %v722 = vadd.f32 %v634, %v721
        %v723 = vpop.f32.mrb[0].mxu0
        %724 = vmatprep.mubr.bf16.mxu0 0
        %725 = vmatmul.mubr.bf16.gmra.mrb[0].mxu0 %v612
        %v726 = vpop.f32.mrb[0].mxu0
        %v727 = vadd.f32 %v634, %v726
        %v728 = vpop.f32.mrb[0].mxu0
        %v729 = vpop.f32.mrb[0].mxu0
        %v730 = vadd.f32 %v634, %v729
        %v731 = vpop.f32.mrb[0].mxu0
        %732 = vdwg.mxu0
        %v733 = vld [vmem:[%s6] sm:$0xf]
        %v734 = vld [vmem:[%s6 + $0x4] sm:$0xf]
        %v735 = vld [vmem:[%s6 + $0x8] sm:$0xf]
        %v736 = vld [vmem:[%s6 + $0xc] sm:$0xf]
        %v737 = vld [vmem:[%s6 + $0x10] sm:$0xf]
        %v738 = vld [vmem:[%s6 + $0x14] sm:$0xf]
        %v739 = vld [vmem:[%s6 + $0x18] sm:$0xf]
        %v740 = vld [vmem:[%s6 + $0x1c] sm:$0xf]
        %v741 = vld [vmem:[%s6 + $0x20] sm:$0xf]
        %v742 = vld [vmem:[%s6 + $0x24] sm:$0xf]
        %v743 = vld [vmem:[%s6 + $0x28] sm:$0xf]
        %v744 = vld [vmem:[%s6 + $0x2c] sm:$0xf]
        %v745 = vld [vmem:[%s6 + $0x30] sm:$0xf]
        %v746 = vld [vmem:[%s6 + $0x34] sm:$0xf]
        %v747 = vld [vmem:[%s6 + $0x38] sm:$0xf]
        %v748 = vld [vmem:[%s6 + $0x3c] sm:$0xf]
        %v749 = vld [vmem:[%s7] sm:$0x1]
        %v751 = vlaneseq
        %v752 = vshrl.u32 %v751, 7
        %v753 = vsub.s32 0, %v752
        %v754 = vrot.slane %v749, %v753
        %v772 = vunpack.c.l.b16 %v733
        %v773 = vunpack.c.l.b16 %v734
        %v774 = vunpack.c.l.b16 %v735
        %v775 = vunpack.c.l.b16 %v736
        %v776 = vunpack.c.l.b16 %v737
        %v777 = vunpack.c.l.b16 %v738
        %v778 = vunpack.c.l.b16 %v739
        %v779 = vunpack.c.l.b16 %v740
        %v780 = vunpack.c.l.b16 %v741
        %v781 = vunpack.c.l.b16 %v742
        %v782 = vunpack.c.l.b16 %v743
        %v783 = vunpack.c.l.b16 %v744
        %v784 = vunpack.c.l.b16 %v745
        %v785 = vunpack.c.l.b16 %v746
        %v786 = vunpack.c.l.b16 %v747
        %v787 = vunpack.c.l.b16 %v748
        %v788 = vpack.c.b16 %v773, %v772
        %v789 = vpack.c.b16 %v775, %v774
        %v790 = vpack.c.b16 %v777, %v776
        %v791 = vpack.c.b16 %v779, %v778
        %v792 = vpack.c.b16 %v781, %v780
        %v793 = vpack.c.b16 %v783, %v782
        %v794 = vpack.c.b16 %v785, %v784
        %v795 = vpack.c.b16 %v787, %v786
        %804 = vmatprep.subr.bf16.mxu0 0
        %805 = vmatpush1.bf16.msra.mxu0 %v788
        %806 = vmatprep.subr.bf16.mxu0 0
        %807 = vmatpush1.bf16.msra.mxu0 %v789
        %808 = vmatprep.subr.bf16.mxu0 0
        %809 = vmatpush1.bf16.msra.mxu0 %v790
        %810 = vmatprep.subr.bf16.mxu0 0
        %811 = vmatpush1.bf16.msra.mxu0 %v791
        %812 = vmatprep.subr.bf16.mxu0 0
        %813 = vmatpush1.bf16.msra.mxu0 %v792
        %814 = vmatprep.subr.bf16.mxu0 0
        %815 = vmatpush1.bf16.msra.mxu0 %v793
        %816 = vmatprep.subr.bf16.mxu0 0
        %817 = vmatpush1.bf16.msra.mxu0 %v794
        %818 = vmatprep.subr.bf16.mxu0 0
        %819 = vmatpush1.bf16.msra.mxu0 %v795
        %820 = vmatprep.subr.bf16.mxu0 0
        %821 = vmatpush1.bf16.msra.mxu0 0
        %822 = vmatprep.subr.bf16.mxu0 0
        %823 = vmatpush1.bf16.msra.mxu0 0
        %824 = vmatprep.subr.bf16.mxu0 0
        %825 = vmatpush1.bf16.msra.mxu0 0
        %826 = vmatprep.subr.bf16.mxu0 0
        %827 = vmatpush1.bf16.msra.mxu0 0
        %828 = vmatprep.subr.bf16.mxu0 0
        %829 = vmatpush1.bf16.msra.mxu0 0
        %830 = vmatprep.subr.bf16.mxu0 0
        %831 = vmatpush1.bf16.msra.mxu0 0
        %832 = vmatprep.subr.bf16.mxu0 0
        %833 = vmatpush1.bf16.msra.mxu0 0
        %834 = vmatprep.subr.bf16.mxu0 0
        %835 = vmatpush1.bf16.msra.mxu0 0
        %836 = vmatprep.mubr.bf16.mxu0 0
        %837 = vmatmul.mubr.bf16.gmra.mrb[0].mxu0 %v611
        %v838 = vpop.f32.mrb[0].mxu0
        %v839 = vadd.f32 %v754, %v838
        %v840 = vpop.f32.mrb[0].mxu0
        %v841 = vpop.f32.mrb[0].mxu0
        %v842 = vadd.f32 %v754, %v841
        %v843 = vpop.f32.mrb[0].mxu0
        %844 = vmatprep.mubr.bf16.mxu0 0
        %845 = vmatmul.mubr.bf16.gmra.mrb[0].mxu0 %v612
        %v846 = vpop.f32.mrb[0].mxu0
        %v847 = vadd.f32 %v754, %v846
        %v848 = vpop.f32.mrb[0].mxu0
        %v849 = vpop.f32.mrb[0].mxu0
        %v850 = vadd.f32 %v754, %v849
        %v851 = vpop.f32.mrb[0].mxu0
        %852 = vdwg.mxu0
        %v853 = vsub.f32 0.0, %v839
        %v854 = vsub.f32 0.0, %v842
        %v855 = vsub.f32 0.0, %v847
        %v856 = vsub.f32 0.0, %v850
        %v857 = vmul.f32 %v853, 1.442695
        %v858 = vpow.pop %v857
        %v859 = vmul.f32 %v854, 1.442695
        %v860 = vpow.pop %v859
        %v861 = vmul.f32 %v855, 1.442695
        %v862 = vpow.pop %v861
        %v863 = vmul.f32 %v856, 1.442695
        %v864 = vpow.pop %v863
        %v865 = vadd.f32 %v858, 1.0
        %v866 = vadd.f32 %v860, 1.0
        %v867 = vadd.f32 %v862, 1.0
        %v868 = vadd.f32 %v864, 1.0
        %v869 = vrcp.pop %v865
        %v870 = vmul.f32 1.0, %v869
        %v871 = vrcp.pop %v866
        %v872 = vmul.f32 1.0, %v871
        %v873 = vrcp.pop %v867
        %v874 = vmul.f32 1.0, %v873
        %v875 = vrcp.pop %v868
        %v876 = vmul.f32 1.0, %v875
        %v877 = vmul.f32 %v719, %v870
        %v878 = vmul.f32 %v722, %v872
        %v879 = vmul.f32 %v727, %v874
        %v880 = vmul.f32 %v730, %v876
        %v881 = vlaneseq
        %v882 = vshrl.u32 %v881, 7
        %v883 = vadd.s32 %v882, 8
        %v884 = vadd.s32 %v882, 16
        %v885 = vadd.s32 %v882, 24
        %v886 = vstv %s472
        %v887 = vadd.s32 %v886, %v882
        %v888 = vadd.s32 %v886, %v883
        %v889 = vadd.s32 %v886, %v884
        %v890 = vadd.s32 %v886, %v885
        %vm891 = vcmp.ge.s32.totalorder %v887, 7
        %vm892 = vcmp.ge.s32.totalorder %v888, 7
        %vm893 = vcmp.ge.s32.totalorder %v889, 7
        %vm894 = vcmp.ge.s32.totalorder %v890, 7
        %vm895 = vcmp.lt.s32.totalorder %v887, 39
        %vm896 = vcmp.lt.s32.totalorder %v888, 39
        %vm897 = vcmp.lt.s32.totalorder %v889, 39
        %vm898 = vcmp.lt.s32.totalorder %v890, 39
        %vm899 = vmand %vm891, %vm895
        %vm900 = vmand %vm892, %vm896
        %vm901 = vmand %vm893, %vm897
        %vm902 = vmand %vm894, %vm898
        %v903 = vsel %vm899, 1, 0
        %v904 = vsel %vm900, 1, 0
        %v905 = vsel %vm901, 1, 0
        %v906 = vsel %vm902, 1, 0
        %vm907 = vcmp.eq.s32.totalorder %v903, 1
        %vm908 = vcmp.eq.s32.totalorder %v904, 1
        %vm909 = vcmp.eq.s32.totalorder %v905, 1
        %vm910 = vcmp.eq.s32.totalorder %v906, 1
        %v911 = vsel %vm907, %v877, 0.0
        %v912 = vsel %vm908, %v878, 0.0
        %v913 = vsel %vm909, %v879, 0.0
        %v914 = vsel %vm910, %v880, 0.0
        %915 = vst [vmem:[#allocation3] sm:$0xff] %v911
        %916 = vst [vmem:[#allocation3 + $0x8] sm:$0xff] %v912
        %917 = vst [vmem:[#allocation3 + $0x10] sm:$0xff] %v913
        %918 = vst [vmem:[#allocation3 + $0x18] sm:$0x3f] %v914
        %v919 = vld [vmem:[#allocation3] sm:$0xff]
        %v920 = vld [vmem:[#allocation3 + $0x8] sm:$0xff]
        %v921 = vld [vmem:[%s8] sm:$0x1]
        %v922 = vlaneseq
        %v923 = vshrl.u32 %v922, 7
        %v924 = vsub.s32 0, %v923
        %v925 = vrot.slane %v921, %v924
        %v926 = vmul.f32 %v919, %v925
        %v927 = vmul.f32 %v920, %v925
        %v928 = vadd.f32 %v926, 0.0
        %v929 = vadd.f32 %v927, 0.0
        %v930 = vld [vmem:[#allocation3 + $0x1] sm:$0xff]
        %v931 = vld [vmem:[#allocation3 + $0x9] sm:$0xff]
        %v932 = vld [vmem:[%s8 + $0x1] sm:$0x1]
        %v933 = vlaneseq
        %v934 = vshrl.u32 %v933, 7
        %v935 = vsub.s32 0, %v934
        %v936 = vrot.slane %v932, %v935
        %v937 = vmul.f32 %v930, %v936
        %v938 = vmul.f32 %v931, %v936
        %v939 = vadd.f32 %v928, %v937
        %v940 = vadd.f32 %v929, %v938
        %v941 = vld [vmem:[#allocation3 + $0x2] sm:$0xff]
        %v942 = vld [vmem:[#allocation3 + $0xa] sm:$0xff]
        %v943 = vld [vmem:[%s8 + $0x2] sm:$0x1]
        %v944 = vlaneseq
        %v945 = vshrl.u32 %v944, 7
        %v946 = vsub.s32 0, %v945
        %v947 = vrot.slane %v943, %v946
        %v948 = vmul.f32 %v941, %v947
        %v949 = vmul.f32 %v942, %v947
        %v950 = vadd.f32 %v939, %v948
        %v951 = vadd.f32 %v940, %v949
        %v952 = vld [vmem:[#allocation3 + $0x3] sm:$0xff]
        %v953 = vld [vmem:[#allocation3 + $0xb] sm:$0xff]
        %v954 = vld [vmem:[%s8 + $0x3] sm:$0x1]
        %v955 = vlaneseq
        %v956 = vshrl.u32 %v955, 7
        %v957 = vsub.s32 0, %v956
        %v958 = vrot.slane %v954, %v957
        %v959 = vmul.f32 %v952, %v958
        %v960 = vmul.f32 %v953, %v958
        %v961 = vadd.f32 %v950, %v959
        %v962 = vadd.f32 %v951, %v960
        %v963 = vld [vmem:[#allocation3 + $0x4] sm:$0xff]
        %v964 = vld [vmem:[#allocation3 + $0xc] sm:$0xff]
        %v965 = vld [vmem:[%s8 + $0x4] sm:$0x1]
        %v966 = vlaneseq
        %v967 = vshrl.u32 %v966, 7
        %v968 = vsub.s32 0, %v967
        %v969 = vrot.slane %v965, %v968
        %v970 = vmul.f32 %v963, %v969
        %v971 = vmul.f32 %v964, %v969
        %v972 = vadd.f32 %v961, %v970
        %v973 = vadd.f32 %v962, %v971
        %v974 = vld [vmem:[#allocation3 + $0x5] sm:$0xff]
        %v975 = vld [vmem:[#allocation3 + $0xd] sm:$0xff]
        %v976 = vld [vmem:[%s8 + $0x5] sm:$0x1]
        %v977 = vlaneseq
        %v978 = vshrl.u32 %v977, 7
        %v979 = vsub.s32 0, %v978
        %v980 = vrot.slane %v976, %v979
        %v981 = vmul.f32 %v974, %v980
        %v982 = vmul.f32 %v975, %v980
        %v983 = vadd.f32 %v972, %v981
        %v984 = vadd.f32 %v973, %v982
        %v985 = vld [vmem:[#allocation3 + $0x6] sm:$0xff]
        %v986 = vld [vmem:[#allocation3 + $0xe] sm:$0xff]
        %v987 = vld [vmem:[%s8 + $0x6] sm:$0x1]
        %v988 = vlaneseq
        %v989 = vshrl.u32 %v988, 7
        %v990 = vsub.s32 0, %v989
        %v991 = vrot.slane %v987, %v990
        %v992 = vmul.f32 %v985, %v991
        %v993 = vmul.f32 %v986, %v991
        %v994 = vadd.f32 %v983, %v992
        %v995 = vadd.f32 %v984, %v993
        %v996 = vld [vmem:[#allocation3 + $0x7] sm:$0xff]
        %v997 = vld [vmem:[#allocation3 + $0xf] sm:$0xff]
        %v998 = vld [vmem:[%s8 + $0x7] sm:$0x1]
        %v999 = vlaneseq
        %v1000 = vshrl.u32 %v999, 7
        %v1001 = vsub.s32 0, %v1000
        %v1002 = vrot.slane %v998, %v1001
        %v1003 = vmul.f32 %v996, %v1002
        %v1004 = vmul.f32 %v997, %v1002
        %v1005 = vadd.f32 %v994, %v1003
        %v1006 = vadd.f32 %v995, %v1004
        %v1007 = vld [vmem:[#allocation3 + $0x10] sm:$0xff]
        %v1008 = vld [vmem:[%s8 + $0x8] sm:$0x1]
        %v1009 = vlaneseq
        %v1010 = vshrl.u32 %v1009, 7
        %v1011 = vsub.s32 0, %v1010
        %v1012 = vrot.slane %v1008, %v1011
        %v1013 = vmul.f32 %v920, %v1012
        %v1014 = vmul.f32 %v1007, %v1012
        %v1015 = vadd.f32 %v1005, %v1013
        %v1016 = vadd.f32 %v1006, %v1014
        %v1017 = vld [vmem:[#allocation3 + $0x11] sm:$0xff]
        %v1018 = vld [vmem:[%s8 + $0x9] sm:$0x1]
        %v1019 = vlaneseq
        %v1020 = vshrl.u32 %v1019, 7
        %v1021 = vsub.s32 0, %v1020
        %v1022 = vrot.slane %v1018, %v1021
        %v1023 = vmul.f32 %v931, %v1022
        %v1024 = vmul.f32 %v1017, %v1022
        %v1025 = vadd.f32 %v1015, %v1023
        %v1026 = vadd.f32 %v1016, %v1024
        %v1027 = vld [vmem:[#allocation3 + $0x12] sm:$0xff]
        %v1028 = vld [vmem:[%s8 + $0xa] sm:$0x1]
        %v1029 = vlaneseq
        %v1030 = vshrl.u32 %v1029, 7
        %v1031 = vsub.s32 0, %v1030
        %v1032 = vrot.slane %v1028, %v1031
        %v1033 = vmul.f32 %v942, %v1032
        %v1034 = vmul.f32 %v1027, %v1032
        %v1035 = vadd.f32 %v1025, %v1033
        %v1036 = vadd.f32 %v1026, %v1034
        %v1037 = vld [vmem:[#allocation3 + $0x13] sm:$0xff]
        %v1038 = vld [vmem:[%s8 + $0xb] sm:$0x1]
        %v1039 = vlaneseq
        %v1040 = vshrl.u32 %v1039, 7
        %v1041 = vsub.s32 0, %v1040
        %v1042 = vrot.slane %v1038, %v1041
        %v1043 = vmul.f32 %v953, %v1042
        %v1044 = vmul.f32 %v1037, %v1042
        %v1045 = vadd.f32 %v1035, %v1043
        %v1046 = vadd.f32 %v1036, %v1044
        %v1047 = vld [vmem:[#allocation3 + $0x14] sm:$0xff]
        %v1048 = vld [vmem:[%s8 + $0xc] sm:$0x1]
        %v1049 = vlaneseq
        %v1050 = vshrl.u32 %v1049, 7
        %v1051 = vsub.s32 0, %v1050
        %v1052 = vrot.slane %v1048, %v1051
        %v1053 = vmul.f32 %v964, %v1052
        %v1054 = vmul.f32 %v1047, %v1052
        %v1055 = vadd.f32 %v1045, %v1053
        %v1056 = vadd.f32 %v1046, %v1054
        %v1057 = vld [vmem:[#allocation3 + $0x15] sm:$0xff]
        %v1058 = vld [vmem:[%s8 + $0xd] sm:$0x1]
        %v1059 = vlaneseq
        %v1060 = vshrl.u32 %v1059, 7
        %v1061 = vsub.s32 0, %v1060
        %v1062 = vrot.slane %v1058, %v1061
        %v1063 = vmul.f32 %v975, %v1062
        %v1064 = vmul.f32 %v1057, %v1062
        %v1065 = vadd.f32 %v1055, %v1063
        %v1066 = vadd.f32 %v1056, %v1064
        %v1067 = vld [vmem:[#allocation3 + $0xe] sm:$0xff]
        %v1068 = vld [vmem:[#allocation3 + $0x16] sm:$0xff]
        %v1069 = vld [vmem:[%s8 + $0xe] sm:$0x1]
        %v1070 = vlaneseq
        %v1071 = vshrl.u32 %v1070, 7
        %v1072 = vsub.s32 0, %v1071
        %v1073 = vrot.slane %v1069, %v1072
        %v1074 = vmul.f32 %v1067, %v1073
        %v1075 = vmul.f32 %v1068, %v1073
        %v1076 = vadd.f32 %v1065, %v1074
        %v1077 = vadd.f32 %v1066, %v1075
        %v1078 = vld [vmem:[%s9] sm:$0x1]
        %v1080 = vlaneseq
        %v1081 = vshrl.u32 %v1080, 7
        %v1082 = vsub.s32 0, %v1081
        %v1083 = vrot.slane %v1078, %v1082
        %v1085 = vadd.f32 %v1076, %v1083
        %v1086 = vadd.f32 %v1077, %v1083
        %v1087 = vld [vmem:[%s10] sm:$0x1]
        %v1088 = vld [vmem:[%s11] sm:$0x1]
        %1089 = vadd.xlane.f32.xlu0 %v1085
        %v1090 = vpop.xlane.xlu0 %1089
        %1091 = vadd.xlane.f32.xlu0 %v1086
        %v1092 = vpop.xlane.xlu0 %1091
        %v1093 = vmul.f32 %v1090, %v553
        %v1094 = vmul.f32 %v1092, %v553
        %v1095 = vsub.f32 %v1085, %v1093
        %v1096 = vsub.f32 %v1086, %v1094
        %v1097 = vmul.f32 %v1095, %v1095
        %v1098 = vmul.f32 %v1096, %v1096
        %1099 = vadd.xlane.f32.xlu0 %v1097
        %v1100 = vpop.xlane.xlu0 %1099
        %1101 = vadd.xlane.f32.xlu0 %v1098
        %v1102 = vpop.xlane.xlu0 %1101
        %v1103 = vmul.f32 %v1100, %v553
        %v1104 = vmul.f32 %v1102, %v553
        %v1105 = vadd.f32 %v1103, 1e-05
        %v1106 = vadd.f32 %v1104, 1e-05
        %v1107 = vrsqrt.pop %v1105
        %v1108 = vrsqrt.pop %v1106
        %v1109 = vmul.f32 %v1095, %v1107
        %v1110 = vmul.f32 %v1096, %v1108
        %v1112 = vlaneseq
        %v1113 = vshrl.u32 %v1112, 7
        %v1114 = vsub.s32 0, %v1113
        %v1115 = vrot.slane %v1087, %v1114
        %v1117 = vmul.f32 %v1109, %v1115
        %v1118 = vmul.f32 %v1110, %v1115
        %v1120 = vlaneseq
        %v1121 = vshrl.u32 %v1120, 7
        %v1122 = vsub.s32 0, %v1121
        %v1123 = vrot.slane %v1088, %v1122
        %v1125 = vadd.f32 %v1117, %v1123
        %v1126 = vadd.f32 %v1118, %v1123
        %v1127 = vsub.f32 0.0, %v1125
        %v1128 = vsub.f32 0.0, %v1126
        %v1129 = vmul.f32 %v1127, 1.442695
        %v1130 = vpow.pop %v1129
        %v1131 = vmul.f32 %v1128, 1.442695
        %v1132 = vpow.pop %v1131
        %v1133 = vadd.f32 %v1130, 1.0
        %v1134 = vadd.f32 %v1132, 1.0
        %v1135 = vrcp.pop %v1133
        %v1136 = vmul.f32 1.0, %v1135
        %v1137 = vrcp.pop %v1134
        %v1138 = vmul.f32 1.0, %v1137
        %v1139 = vmul.f32 %v1125, %v1136
        %v1140 = vmul.f32 %v1126, %v1138
        %v1141 = vpack.c.bf16 %v1140, %v1139
        %v1142 = vld [vmem:[%s12] sm:$0xf]
        %v1143 = vld [vmem:[%s12 + $0x4] sm:$0xf]
        %v1144 = vld [vmem:[%s12 + $0x8] sm:$0xf]
        %v1145 = vld [vmem:[%s12 + $0xc] sm:$0xf]
        %v1146 = vld [vmem:[%s12 + $0x10] sm:$0xf]
        %v1147 = vld [vmem:[%s12 + $0x14] sm:$0xf]
        %v1148 = vld [vmem:[%s12 + $0x18] sm:$0xf]
        %v1149 = vld [vmem:[%s12 + $0x1c] sm:$0xf]
        %v1150 = vld [vmem:[%s12 + $0x20] sm:$0xf]
        %v1151 = vld [vmem:[%s12 + $0x24] sm:$0xf]
        %v1152 = vld [vmem:[%s12 + $0x28] sm:$0xf]
        %v1153 = vld [vmem:[%s12 + $0x2c] sm:$0xf]
        %v1154 = vld [vmem:[%s12 + $0x30] sm:$0xf]
        %v1155 = vld [vmem:[%s12 + $0x34] sm:$0xf]
        %v1156 = vld [vmem:[%s12 + $0x38] sm:$0xf]
        %v1157 = vld [vmem:[%s12 + $0x3c] sm:$0xf]
        %v1158 = vld [vmem:[%s13] sm:$0x1]
        %v1160 = vlaneseq
        %v1161 = vshrl.u32 %v1160, 7
        %v1162 = vsub.s32 0, %v1161
        %v1163 = vrot.slane %v1158, %v1162
        %v1181 = vunpack.c.l.b16 %v1142
        %v1182 = vunpack.c.l.b16 %v1143
        %v1183 = vunpack.c.l.b16 %v1144
        %v1184 = vunpack.c.l.b16 %v1145
        %v1185 = vunpack.c.l.b16 %v1146
        %v1186 = vunpack.c.l.b16 %v1147
        %v1187 = vunpack.c.l.b16 %v1148
        %v1188 = vunpack.c.l.b16 %v1149
        %v1189 = vunpack.c.l.b16 %v1150
        %v1190 = vunpack.c.l.b16 %v1151
        %v1191 = vunpack.c.l.b16 %v1152
        %v1192 = vunpack.c.l.b16 %v1153
        %v1193 = vunpack.c.l.b16 %v1154
        %v1194 = vunpack.c.l.b16 %v1155
        %v1195 = vunpack.c.l.b16 %v1156
        %v1196 = vunpack.c.l.b16 %v1157
        %v1197 = vpack.c.b16 %v1182, %v1181
        %v1198 = vpack.c.b16 %v1184, %v1183
        %v1199 = vpack.c.b16 %v1186, %v1185
        %v1200 = vpack.c.b16 %v1188, %v1187
        %v1201 = vpack.c.b16 %v1190, %v1189
        %v1202 = vpack.c.b16 %v1192, %v1191
        %v1203 = vpack.c.b16 %v1194, %v1193
        %v1204 = vpack.c.b16 %v1196, %v1195
        %1213 = vmatprep.subr.bf16.mxu0 0
        %1214 = vmatpush1.bf16.msra.mxu0 %v1197
        %1215 = vmatprep.subr.bf16.mxu0 0
        %1216 = vmatpush1.bf16.msra.mxu0 %v1198
        %1217 = vmatprep.subr.bf16.mxu0 0
        %1218 = vmatpush1.bf16.msra.mxu0 %v1199
        %1219 = vmatprep.subr.bf16.mxu0 0
        %1220 = vmatpush1.bf16.msra.mxu0 %v1200
        %1221 = vmatprep.subr.bf16.mxu0 0
        %1222 = vmatpush1.bf16.msra.mxu0 %v1201
        %1223 = vmatprep.subr.bf16.mxu0 0
        %1224 = vmatpush1.bf16.msra.mxu0 %v1202
        %1225 = vmatprep.subr.bf16.mxu0 0
        %1226 = vmatpush1.bf16.msra.mxu0 %v1203
        %1227 = vmatprep.subr.bf16.mxu0 0
        %1228 = vmatpush1.bf16.msra.mxu0 %v1204
        %1229 = vmatprep.subr.bf16.mxu0 0
        %1230 = vmatpush1.bf16.msra.mxu0 0
        %1231 = vmatprep.subr.bf16.mxu0 0
        %1232 = vmatpush1.bf16.msra.mxu0 0
        %1233 = vmatprep.subr.bf16.mxu0 0
        %1234 = vmatpush1.bf16.msra.mxu0 0
        %1235 = vmatprep.subr.bf16.mxu0 0
        %1236 = vmatpush1.bf16.msra.mxu0 0
        %1237 = vmatprep.subr.bf16.mxu0 0
        %1238 = vmatpush1.bf16.msra.mxu0 0
        %1239 = vmatprep.subr.bf16.mxu0 0
        %1240 = vmatpush1.bf16.msra.mxu0 0
        %1241 = vmatprep.subr.bf16.mxu0 0
        %1242 = vmatpush1.bf16.msra.mxu0 0
        %1243 = vmatprep.subr.bf16.mxu0 0
        %1244 = vmatpush1.bf16.msra.mxu0 0
        %1245 = vmatprep.mubr.bf16.mxu0 0
        %1246 = vmatmul.mubr.bf16.gmra.mrb[0].mxu0 %v1141
        %v1247 = vpop.f32.mrb[0].mxu0
        %v1248 = vadd.f32 %v1163, %v1247
        %v1249 = vpop.f32.mrb[0].mxu0
        %v1250 = vpop.f32.mrb[0].mxu0
        %v1251 = vadd.f32 %v1163, %v1250
        %v1252 = vpop.f32.mrb[0].mxu0
        %1253 = vdwg.mxu0
        %v1254 = vld [vmem:[%s468] sm:$0xff]
        %v1255 = vld [vmem:[%s468 + $0x8] sm:$0xff]
        %1257 = vset.pattern.permute.xlu0 0
        %1258 = vperm.xlu0 %1257, %v1254
        %v1259 = vpop.permute.xlu0 %1258
        %1262 = vset.pattern.permute.xlu0 0
        %1263 = vperm.xlu0 %1262, %v1255
        %v1264 = vpop.permute.xlu0 %1263
        %v1266 = vmul.f32 %v1248, %v1259
        %v1267 = vmul.f32 %v1251, %v1264
        %1268 = vst [vmem:[%s459] sm:$0xff] %v1266
        %1269 = vst [vmem:[%s459 + $0x8] sm:$0xff] %v1267
        %s1270 = sand.u32 %s330, 1
        %s1271 = scalar_lea.sflag [#allocation6], %s1270
        %s1272 = sand.u32 %s330, 1
        %s1273 = smul.addr %s1272, 16
        %s1274 = scalar_lea.vmem [#allocation5], %s1273
        // Predicated region
        $region110: #{tpu_custom_call.1} parent=71 // pred_check
          %p1275 = pneg %p340
        $region111: #{tpu_custom_call.1} parent=71 // pred_check_branch
          %1277 = sbr.rel (%p1275) target = $region113
        $region112: #{tpu_custom_call.1} parent=71 // pred_region
          %s1278 = smul.u32 2, %s33
          %s1280 = ssub.s32 256, 256
          %1281 = vsyncadd %s1271, %s1280
          %s1282 = smul.addr %s32, 4
          %s1283 = sadd.s32 %s1278, %s1282
          %s1284 = smul.addr %s1283, 128
          %s1285 = scalar_lea.hbm %s14, %s1284
          %s1286 = sshll.u32 %s1274, 4
          %s1287 = int_to_ptr.vmem [resolvable:$true] %s1286
          %1292 = dma.vmem_to_hbm [thread:$0]  %s1287, 256, %s1285, %s1271, 128, 128, 8
        $region113: #{tpu_custom_call.1} parent=71 // pred_fallthru
          _
      $region72: #{tpu_custom_call.1} parent=5 // pred_fallthru
        _
      %p1293 = scmp.le.s32.totalorder 2, %s23
      // Predicated region
      $region114: #{tpu_custom_call.1} parent=5 // pred_check
        %p1294 = pneg %p1293
      $region115: #{tpu_custom_call.1} parent=5 // pred_check_branch
        %1296 = sbr.rel (%p1294) target = $region117
      $region116: #{tpu_custom_call.1} parent=5 // pred_region
        %s1297 = ssub.s32 %s23, 2
        // Predicated region
        $region118: #{tpu_custom_call.1} parent=116 // pred_check
          %p1298 = pneg %p346
        $region119: #{tpu_custom_call.1} parent=116 // pred_check_branch
          %1300 = sbr.rel (%p1298) target = $region121
        $region120: #{tpu_custom_call.1} parent=116 // pred_region
          %s1301 = sand.u32 %s331, 1
          %s1302 = scalar_lea.sflag [#allocation6], %s1301
          %s1303 = sand.u32 %s331, 1
          %s1304 = smul.addr %s1303, 16
          %s1305 = scalar_lea.vmem [#allocation5], %s1304
          %1306 = dma.done %s1302, 256
        $region121: #{tpu_custom_call.1} parent=116 // pred_fallthru
          _
      $region117: #{tpu_custom_call.1} parent=5 // pred_fallthru
        _
    $region6: #{tpu_custom_call.1} parent=1 // loop_footer
      %s27 = sadd.s32 1, %s23
    $region7: #{tpu_custom_call.1} parent=1 // loop_footer_branch
      %22 = sbr.rel target = $region3
    $region8: #{tpu_custom_call.1} parent=1 // loop_exit
      _
    %1307 = vsyncpa [#allocation6], 1
    %s1308 = scalar_lea.sflag [#allocation6], 1
    %1309 = vsyncpa %s1308, 1
  %1310 = vsyncmov [#allocation4]
  %s1311 = vpop.sfrf %1310
  %p1312 = scmp.eq.s32.totalorder %s1311, 0
  %p1313 = pneg %p1312
  %1315 = shalt.err (%p1313)

</llo_original>
